<compile_context>
chip_gen: v7x
topology: tpu7x:2x2x1
jax: 0.10.0
libtpu: 0.0.40
codegen_flags: <defaults>
</compile_context>

<pallas_src>
import functools

import jax
import jax.numpy as jnp
from jax.experimental import pallas as pl
from jax.experimental.pallas import tpu as pltpu


# Model dims (from the PyTorch module)
INPUT = 26
HIDDEN = 100
FC1 = 24
FC2 = 24

# Lane/sublane-padded dims used inside the kernel
HP = 128   # hidden padded to a full lane group
IP = 128   # input features padded to a full lane group
FP = 128   # fc output dims padded to a full lane group
BP = 8     # batch padded to a full sublane group


def gru_fused_kernel(x2d_ref, wi_ref, wh_ref, bi_ref, bhn_ref,
                     w1_ref, b1_ref, w2_ref, b2_ref, o_ref, gi_ref,
                     *, seq_len, batch_p):
    # ---- Hoisted input projection (off the serial path): one bf16 MXU matmul -------
    # Result goes to a VMEM scratch so the 8-step unroll doesn't keep 24 vregs live.
    gi_ref[...] = (jnp.dot(x2d_ref[...], wi_ref[...],
                           preferred_element_type=jnp.float32) + bi_ref[...])

    bhn = bhn_ref[...]                               # (1, Hp) n-gate recurrent bias
    h = jnp.zeros((batch_p, HP), jnp.float32)

    # ---- Serial GRU recurrence, fully unrolled (small static T) --------------------
    for t in range(seq_len):
        gi_t = gi_ref[t * batch_p:(t + 1) * batch_p, :]          # (Bp, 3*Hp) from VMEM
        # bf16 MXU inputs, f32 accumulate; dot consumes wh_ref directly from VMEM.
        gh_t = jnp.dot(h.astype(jnp.bfloat16), wh_ref[...],
                       preferred_element_type=jnp.float32)        # (Bp, 3*Hp)

        gi_r, gi_z, gi_n = gi_t[:, 0:HP], gi_t[:, HP:2 * HP], gi_t[:, 2 * HP:3 * HP]
        gh_r, gh_z, gh_n = gh_t[:, 0:HP], gh_t[:, HP:2 * HP], gh_t[:, 2 * HP:3 * HP]

        # r/z recurrent biases were folded into bi at init; only the n bias remains.
        r = jax.nn.sigmoid(gi_r + gh_r)
        z = jax.nn.sigmoid(gi_z + gh_z)
        n = jnp.tanh(gi_n + r * (gh_n + bhn))
        h = n + z * (h - n)                                       # == (1-z)*n + z*h

    # ---- Fused classifier head: sigmoid(fc2(fc1(hn))), no activation in between ----
    z1 = jnp.dot(h.astype(jnp.bfloat16), w1_ref[...],
                 preferred_element_type=jnp.float32) + b1_ref[...]
    z2 = jnp.dot(z1.astype(jnp.bfloat16), w2_ref[...],
                 preferred_element_type=jnp.float32) + b2_ref[...]
    o_ref[...] = jax.nn.sigmoid(z2)


def prepare_params(wi, wh, bi, bh, w1, b1, w2, b2):
    """One-time (init-time) weight prep: zero-pad to lane-dense shapes, concatenate
    gates, fold recurrent r/z biases into the input-side bias, and pre-cast matmul
    operands to bf16.  Gate order [r, z, n]; all weights already (in, out)."""
    I = wi.shape[1]
    H = wh.shape[-1]
    F1 = w1.shape[-1]
    F2 = w2.shape[-1]
    assert I <= IP and H <= HP and F1 <= FP and F2 <= FP

    wi_cat = jnp.concatenate(
        [jnp.pad(wi[g], ((0, IP - I), (0, HP - H))) for g in range(3)],
        axis=1).astype(jnp.bfloat16)                                      # (Ip, 3*Hp)
    wh_cat = jnp.concatenate(
        [jnp.pad(wh[g], ((0, HP - H), (0, HP - H))) for g in range(3)],
        axis=1).astype(jnp.bfloat16)                                      # (Hp, 3*Hp)

    # Fold bh_r, bh_z into the input-side bias (mathematically identical); keep bh_n
    # separate because PyTorch applies it inside the r-gate multiply.
    bi_cat = jnp.concatenate(
        [jnp.pad(bi[0] + bh[0], ((0, 0), (0, HP - H))),
         jnp.pad(bi[1] + bh[1], ((0, 0), (0, HP - H))),
         jnp.pad(bi[2], ((0, 0), (0, HP - H)))],
        axis=1).astype(jnp.float32)                                       # (1, 3*Hp)
    bhn = jnp.pad(bh[2], ((0, 0), (0, HP - H))).astype(jnp.float32)       # (1, Hp)

    w1_p = jnp.pad(w1, ((0, HP - H), (0, FP - F1))).astype(jnp.bfloat16)  # (Hp, Fp)
    b1_p = jnp.pad(b1, ((0, 0), (0, FP - F1))).astype(jnp.float32)        # (1, Fp)
    w2_p = jnp.pad(w2, ((0, FP - F1), (0, FP - F2))).astype(jnp.bfloat16)  # (Fp, Fp)
    b2_p = jnp.pad(b2, ((0, 0), (0, FP - F2))).astype(jnp.float32)        # (1, Fp)

    return (wi_cat, wh_cat, bi_cat, bhn, w1_p, b1_p, w2_p, b2_p)


@jax.jit
def gru_model_forward(x, params):
    """x: (T, B, I) time-major f32.  params: output of prepare_params()."""
    wi_cat, wh_cat, bi_cat, bhn, w1_p, b1_p, w2_p, b2_p = params
    T, B, I = x.shape
    assert B <= BP and I <= IP

    # Only per-call activation prep remains: pad batch/features, flatten time, bf16.
    x_p = jnp.pad(x, ((0, 0), (0, BP - B), (0, IP - I)))                  # (T, Bp, Ip)
    x2d = x_p.reshape(T * BP, IP).astype(jnp.bfloat16)

    vmem = pl.BlockSpec(memory_space=pltpu.MemorySpace.VMEM)
    kernel = functools.partial(gru_fused_kernel, seq_len=T, batch_p=BP)

    out = pl.pallas_call(
        kernel,
        out_shape=jax.ShapeDtypeStruct((BP, FP), jnp.float32),
        in_specs=[vmem] * 9,
        out_specs=vmem,
        scratch_shapes=[pltpu.VMEM((T * BP, 3 * HP), jnp.float32)],
    )(x2d, wi_cat, wh_cat, bi_cat, bhn, w1_p, b1_p, w2_p, b2_p)

    # hn corresponds to np.squeeze(hn) in the PyTorch forward; slice off padding.
    return out[:B, :FC2]


def _reference_forward(x, wi, wh, bi, bh, w1, b1, w2, b2):
    """Pure-JAX f32 reference (lax.scan GRU) for correctness checking."""
    T, B, I = x.shape
    H = wh.shape[-1]

    def step(h, x_t):
        gi = jnp.einsum("bi,gio->gbo", x_t, wi) + bi
        gh = jnp.einsum("bh,gho->gbo", h, wh) + bh
        r = jax.nn.sigmoid(gi[0] + gh[0])
        z = jax.nn.sigmoid(gi[1] + gh[1])
        n = jnp.tanh(gi[2] + r * gh[2])
        h_new = (1.0 - z) * n + z * h
        return h_new, None

    h0 = jnp.zeros((B, H), jnp.float32)
    hn, _ = jax.lax.scan(step, h0, x)
    z1 = hn @ w1 + b1
    z2 = z1 @ w2 + b2
    return jax.nn.sigmoid(z2)


if __name__ == "__main__":
    key = jax.random.PRNGKey(0)
    T, B, I, H, F1, F2 = 8, 4, INPUT, HIDDEN, FC1, FC2

    keys = jax.random.split(key, 10)
    s_gru = 1.0 / jnp.sqrt(jnp.float32(H))
    s_fc1 = 1.0 / jnp.sqrt(jnp.float32(H))
    s_fc2 = 1.0 / jnp.sqrt(jnp.float32(F1))

    x = jax.random.normal(keys[0], (T, B, I), jnp.float32)

    # GRU params: gate order [r, z, n], pre-transposed to (in, out).
    wi = jax.random.uniform(keys[1], (3, I, H), jnp.float32, -s_gru, s_gru)
    wh = jax.random.uniform(keys[2], (3, H, H), jnp.float32, -s_gru, s_gru)
    bi = jax.random.uniform(keys[3], (3, 1, H), jnp.float32, -s_gru, s_gru)
    bh = jax.random.uniform(keys[4], (3, 1, H), jnp.float32, -s_gru, s_gru)

    # Linear layers, stored as (in, out) / (1, out).
    w1 = jax.random.uniform(keys[5], (H, F1), jnp.float32, -s_fc1, s_fc1)
    b1 = jax.random.uniform(keys[6], (1, F1), jnp.float32, -s_fc1, s_fc1)
    w2 = jax.random.uniform(keys[7], (F1, F2), jnp.float32, -s_fc2, s_fc2)
    b2 = jax.random.uniform(keys[8], (1, F2), jnp.float32, -s_fc2, s_fc2)

    # One-time weight prep (hoisted out of the per-call forward).
    params = prepare_params(wi, wh, bi, bh, w1, b1, w2, b2)
    params = jax.block_until_ready(params)

    out = gru_model_forward(x, params)
    out = jax.block_until_ready(out)

    with jax.default_matmul_precision("highest"):
        ref = _reference_forward(x, wi, wh, bi, bh, w1, b1, w2, b2)
        ref = jax.block_until_ready(ref)

    assert out.shape == (B, F2), out.shape
    max_err = float(jnp.max(jnp.abs(out - ref)))
    # Tolerance deliberately relaxed: MXU operands are bf16 (f32 accumulate), so the
    # 8-step recurrence accumulates ~1e-2-level deviation vs. the all-f32 reference.
    assert jnp.allclose(out, ref, atol=3e-2, rtol=3e-2), max_err

    print("KERNEL_OK")
</pallas_src>

<mosaic_0001>
module attributes {stable_mosaic.version = 11 : i64} {
  func.func @gru_fused_kernel(%arg0: memref<64x128xbf16, #tpu.memory_space<vmem>>, %arg1: memref<128x384xbf16, #tpu.memory_space<vmem>>, %arg2: memref<128x384xbf16, #tpu.memory_space<vmem>>, %arg3: memref<1x384xf32, #tpu.memory_space<vmem>>, %arg4: memref<1x128xf32, #tpu.memory_space<vmem>>, %arg5: memref<128x128xbf16, #tpu.memory_space<vmem>>, %arg6: memref<1x128xf32, #tpu.memory_space<vmem>>, %arg7: memref<128x128xbf16, #tpu.memory_space<vmem>>, %arg8: memref<1x128xf32, #tpu.memory_space<vmem>>, %arg9: memref<8x128xf32, #tpu.memory_space<vmem>>, %arg10: memref<64x384xf32, #tpu.memory_space<vmem>>) attributes {dimension_semantics = [], scalar_prefetch = 0 : i64, scratch_operands = 1 : i64, tpu.core_type = #tpu.core_type<tc>} {
    %c0 = arith.constant 0 : index
    %c0_0 = arith.constant 0 : index
    %0 = vector.load %arg0[%c0, %c0_0] : memref<64x128xbf16, #tpu.memory_space<vmem>>, vector<64x128xbf16>
    %c0_1 = arith.constant 0 : index
    %c0_2 = arith.constant 0 : index
    %1 = vector.load %arg1[%c0_1, %c0_2] : memref<128x384xbf16, #tpu.memory_space<vmem>>, vector<128x384xbf16>
    %cst = arith.constant dense<0.000000e+00> : vector<64x384xf32>
    %2 = tpu.matmul %0, %1, %cst {dimension_numbers = #tpu.dot_dimension_numbers<[1], [0], [0], [1], [0, 0, 1, 1], [], []>} : vector<64x128xbf16>, vector<128x384xbf16>, vector<64x384xf32> -> vector<64x384xf32>
    %c0_3 = arith.constant 0 : index
    %c0_4 = arith.constant 0 : index
    %3 = vector.load %arg3[%c0_3, %c0_4] : memref<1x384xf32, #tpu.memory_space<vmem>>, vector<1x384xf32>
    %4 = vector.broadcast %3 : vector<1x384xf32> to vector<64x384xf32>
    %5 = arith.addf %2, %4 : vector<64x384xf32>
    %c0_5 = arith.constant 0 : index
    %c0_6 = arith.constant 0 : index
    %6 = vector.load %arg10[%c0_5, %c0_6] : memref<64x384xf32, #tpu.memory_space<vmem>>, vector<64x384xf32>
    tpu.vector_store %arg10[%c0_5, %c0_6], %5 {strides = array<i32>} : memref<64x384xf32, #tpu.memory_space<vmem>>, vector<64x384xf32>,
    %c0_7 = arith.constant 0 : index
    %c0_8 = arith.constant 0 : index
    %7 = vector.load %arg4[%c0_7, %c0_8] : memref<1x128xf32, #tpu.memory_space<vmem>>, vector<1x128xf32>
    %cst_9 = arith.constant 0.000000e+00 : f32
    %8 = vector.broadcast %cst_9 : f32 to vector<8x128xf32>
    %c0_10 = arith.constant 0 : index
    %c0_11 = arith.constant 0 : index
    %9 = vector.load %arg10[%c0_10, %c0_11] : memref<64x384xf32, #tpu.memory_space<vmem>>, vector<8x384xf32>
    %10 = arith.truncf %8 : vector<8x128xf32> to vector<8x128xbf16>
    %c0_12 = arith.constant 0 : index
    %c0_13 = arith.constant 0 : index
    %11 = vector.load %arg2[%c0_12, %c0_13] : memref<128x384xbf16, #tpu.memory_space<vmem>>, vector<128x384xbf16>
    %cst_14 = arith.constant dense<0.000000e+00> : vector<8x384xf32>
    %12 = tpu.matmul %10, %11, %cst_14 {dimension_numbers = #tpu.dot_dimension_numbers<[1], [0], [0], [1], [0, 0, 1, 1], [], []>} : vector<8x128xbf16>, vector<128x384xbf16>, vector<8x384xf32> -> vector<8x384xf32>
    %13 = vector.extract_strided_slice %9 {offsets = [0, 0], sizes = [8, 128], strides = [1, 1]} : vector<8x384xf32> to vector<8x128xf32>
    %14 = vector.extract_strided_slice %9 {offsets = [0, 128], sizes = [8, 128], strides = [1, 1]} : vector<8x384xf32> to vector<8x128xf32>
    %15 = vector.extract_strided_slice %9 {offsets = [0, 256], sizes = [8, 128], strides = [1, 1]} : vector<8x384xf32> to vector<8x128xf32>
    %16 = vector.extract_strided_slice %12 {offsets = [0, 0], sizes = [8, 128], strides = [1, 1]} : vector<8x384xf32> to vector<8x128xf32>
    %17 = vector.extract_strided_slice %12 {offsets = [0, 128], sizes = [8, 128], strides = [1, 1]} : vector<8x384xf32> to vector<8x128xf32>
    %18 = vector.extract_strided_slice %12 {offsets = [0, 256], sizes = [8, 128], strides = [1, 1]} : vector<8x384xf32> to vector<8x128xf32>
    %19 = arith.addf %13, %16 : vector<8x128xf32>
    %20 = arith.negf %19 : vector<8x128xf32>
    %21 = math.exp %20 : vector<8x128xf32>
    %cst_15 = arith.constant 1.000000e+00 : f32
    %22 = vector.broadcast %cst_15 : f32 to vector<8x128xf32>
    %23 = arith.addf %22, %21 : vector<8x128xf32>
    %24 = arith.divf %22, %23 : vector<8x128xf32>
    %25 = arith.addf %14, %17 : vector<8x128xf32>
    %26 = arith.negf %25 : vector<8x128xf32>
    %27 = math.exp %26 : vector<8x128xf32>
    %cst_16 = arith.constant 1.000000e+00 : f32
    %28 = vector.broadcast %cst_16 : f32 to vector<8x128xf32>
    %29 = arith.addf %28, %27 : vector<8x128xf32>
    %30 = arith.divf %28, %29 : vector<8x128xf32>
    %31 = vector.broadcast %7 : vector<1x128xf32> to vector<8x128xf32>
    %32 = arith.addf %18, %31 : vector<8x128xf32>
    %33 = arith.mulf %24, %32 : vector<8x128xf32>
    %34 = arith.addf %15, %33 : vector<8x128xf32>
    %35 = math.tanh %34 : vector<8x128xf32>
    %36 = arith.subf %8, %35 : vector<8x128xf32>
    %37 = arith.mulf %30, %36 : vector<8x128xf32>
    %38 = arith.addf %35, %37 : vector<8x128xf32>
    %c8 = arith.constant 8 : index
    %c0_17 = arith.constant 0 : index
    %39 = vector.load %arg10[%c8, %c0_17] : memref<64x384xf32, #tpu.memory_space<vmem>>, vector<8x384xf32>
    %40 = arith.truncf %38 : vector<8x128xf32> to vector<8x128xbf16>
    %c0_18 = arith.constant 0 : index
    %c0_19 = arith.constant 0 : index
    %41 = vector.load %arg2[%c0_18, %c0_19] : memref<128x384xbf16, #tpu.memory_space<vmem>>, vector<128x384xbf16>
    %cst_20 = arith.constant dense<0.000000e+00> : vector<8x384xf32>
    %42 = tpu.matmul %40, %41, %cst_20 {dimension_numbers = #tpu.dot_dimension_numbers<[1], [0], [0], [1], [0, 0, 1, 1], [], []>} : vector<8x128xbf16>, vector<128x384xbf16>, vector<8x384xf32> -> vector<8x384xf32>
    %43 = vector.extract_strided_slice %39 {offsets = [0, 0], sizes = [8, 128], strides = [1, 1]} : vector<8x384xf32> to vector<8x128xf32>
    %44 = vector.extract_strided_slice %39 {offsets = [0, 128], sizes = [8, 128], strides = [1, 1]} : vector<8x384xf32> to vector<8x128xf32>
    %45 = vector.extract_strided_slice %39 {offsets = [0, 256], sizes = [8, 128], strides = [1, 1]} : vector<8x384xf32> to vector<8x128xf32>
    %46 = vector.extract_strided_slice %42 {offsets = [0, 0], sizes = [8, 128], strides = [1, 1]} : vector<8x384xf32> to vector<8x128xf32>
    %47 = vector.extract_strided_slice %42 {offsets = [0, 128], sizes = [8, 128], strides = [1, 1]} : vector<8x384xf32> to vector<8x128xf32>
    %48 = vector.extract_strided_slice %42 {offsets = [0, 256], sizes = [8, 128], strides = [1, 1]} : vector<8x384xf32> to vector<8x128xf32>
    %49 = arith.addf %43, %46 : vector<8x128xf32>
    %50 = arith.negf %49 : vector<8x128xf32>
    %51 = math.exp %50 : vector<8x128xf32>
    %cst_21 = arith.constant 1.000000e+00 : f32
    %52 = vector.broadcast %cst_21 : f32 to vector<8x128xf32>
    %53 = arith.addf %52, %51 : vector<8x128xf32>
    %54 = arith.divf %52, %53 : vector<8x128xf32>
    %55 = arith.addf %44, %47 : vector<8x128xf32>
    %56 = arith.negf %55 : vector<8x128xf32>
    %57 = math.exp %56 : vector<8x128xf32>
    %cst_22 = arith.constant 1.000000e+00 : f32
    %58 = vector.broadcast %cst_22 : f32 to vector<8x128xf32>
    %59 = arith.addf %58, %57 : vector<8x128xf32>
    %60 = arith.divf %58, %59 : vector<8x128xf32>
    %61 = vector.broadcast %7 : vector<1x128xf32> to vector<8x128xf32>
    %62 = arith.addf %48, %61 : vector<8x128xf32>
    %63 = arith.mulf %54, %62 : vector<8x128xf32>
    %64 = arith.addf %45, %63 : vector<8x128xf32>
    %65 = math.tanh %64 : vector<8x128xf32>
    %66 = arith.subf %38, %65 : vector<8x128xf32>
    %67 = arith.mulf %60, %66 : vector<8x128xf32>
    %68 = arith.addf %65, %67 : vector<8x128xf32>
    %c16 = arith.constant 16 : index
    %c0_23 = arith.constant 0 : index
    %69 = vector.load %arg10[%c16, %c0_23] : memref<64x384xf32, #tpu.memory_space<vmem>>, vector<8x384xf32>
    %70 = arith.truncf %68 : vector<8x128xf32> to vector<8x128xbf16>
    %c0_24 = arith.constant 0 : index
    %c0_25 = arith.constant 0 : index
    %71 = vector.load %arg2[%c0_24, %c0_25] : memref<128x384xbf16, #tpu.memory_space<vmem>>, vector<128x384xbf16>
    %cst_26 = arith.constant dense<0.000000e+00> : vector<8x384xf32>
    %72 = tpu.matmul %70, %71, %cst_26 {dimension_numbers = #tpu.dot_dimension_numbers<[1], [0], [0], [1], [0, 0, 1, 1], [], []>} : vector<8x128xbf16>, vector<128x384xbf16>, vector<8x384xf32> -> vector<8x384xf32>
    %73 = vector.extract_strided_slice %69 {offsets = [0, 0], sizes = [8, 128], strides = [1, 1]} : vector<8x384xf32> to vector<8x128xf32>
    %74 = vector.extract_strided_slice %69 {offsets = [0, 128], sizes = [8, 128], strides = [1, 1]} : vector<8x384xf32> to vector<8x128xf32>
    %75 = vector.extract_strided_slice %69 {offsets = [0, 256], sizes = [8, 128], strides = [1, 1]} : vector<8x384xf32> to vector<8x128xf32>
    %76 = vector.extract_strided_slice %72 {offsets = [0, 0], sizes = [8, 128], strides = [1, 1]} : vector<8x384xf32> to vector<8x128xf32>
    %77 = vector.extract_strided_slice %72 {offsets = [0, 128], sizes = [8, 128], strides = [1, 1]} : vector<8x384xf32> to vector<8x128xf32>
    %78 = vector.extract_strided_slice %72 {offsets = [0, 256], sizes = [8, 128], strides = [1, 1]} : vector<8x384xf32> to vector<8x128xf32>
    %79 = arith.addf %73, %76 : vector<8x128xf32>
    %80 = arith.negf %79 : vector<8x128xf32>
    %81 = math.exp %80 : vector<8x128xf32>
    %cst_27 = arith.constant 1.000000e+00 : f32
    %82 = vector.broadcast %cst_27 : f32 to vector<8x128xf32>
    %83 = arith.addf %82, %81 : vector<8x128xf32>
    %84 = arith.divf %82, %83 : vector<8x128xf32>
    %85 = arith.addf %74, %77 : vector<8x128xf32>
    %86 = arith.negf %85 : vector<8x128xf32>
    %87 = math.exp %86 : vector<8x128xf32>
    %cst_28 = arith.constant 1.000000e+00 : f32
    %88 = vector.broadcast %cst_28 : f32 to vector<8x128xf32>
    %89 = arith.addf %88, %87 : vector<8x128xf32>
    %90 = arith.divf %88, %89 : vector<8x128xf32>
    %91 = vector.broadcast %7 : vector<1x128xf32> to vector<8x128xf32>
    %92 = arith.addf %78, %91 : vector<8x128xf32>
    %93 = arith.mulf %84, %92 : vector<8x128xf32>
    %94 = arith.addf %75, %93 : vector<8x128xf32>
    %95 = math.tanh %94 : vector<8x128xf32>
    %96 = arith.subf %68, %95 : vector<8x128xf32>
    %97 = arith.mulf %90, %96 : vector<8x128xf32>
    %98 = arith.addf %95, %97 : vector<8x128xf32>
    %c24 = arith.constant 24 : index
    %c0_29 = arith.constant 0 : index
    %99 = vector.load %arg10[%c24, %c0_29] : memref<64x384xf32, #tpu.memory_space<vmem>>, vector<8x384xf32>
    %100 = arith.truncf %98 : vector<8x128xf32> to vector<8x128xbf16>
    %c0_30 = arith.constant 0 : index
    %c0_31 = arith.constant 0 : index
    %101 = vector.load %arg2[%c0_30, %c0_31] : memref<128x384xbf16, #tpu.memory_space<vmem>>, vector<128x384xbf16>
    %cst_32 = arith.constant dense<0.000000e+00> : vector<8x384xf32>
    %102 = tpu.matmul %100, %101, %cst_32 {dimension_numbers = #tpu.dot_dimension_numbers<[1], [0], [0], [1], [0, 0, 1, 1], [], []>} : vector<8x128xbf16>, vector<128x384xbf16>, vector<8x384xf32> -> vector<8x384xf32>
    %103 = vector.extract_strided_slice %99 {offsets = [0, 0], sizes = [8, 128], strides = [1, 1]} : vector<8x384xf32> to vector<8x128xf32>
    %104 = vector.extract_strided_slice %99 {offsets = [0, 128], sizes = [8, 128], strides = [1, 1]} : vector<8x384xf32> to vector<8x128xf32>
    %105 = vector.extract_strided_slice %99 {offsets = [0, 256], sizes = [8, 128], strides = [1, 1]} : vector<8x384xf32> to vector<8x128xf32>
    %106 = vector.extract_strided_slice %102 {offsets = [0, 0], sizes = [8, 128], strides = [1, 1]} : vector<8x384xf32> to vector<8x128xf32>
    %107 = vector.extract_strided_slice %102 {offsets = [0, 128], sizes = [8, 128], strides = [1, 1]} : vector<8x384xf32> to vector<8x128xf32>
    %108 = vector.extract_strided_slice %102 {offsets = [0, 256], sizes = [8, 128], strides = [1, 1]} : vector<8x384xf32> to vector<8x128xf32>
    %109 = arith.addf %103, %106 : vector<8x128xf32>
    %110 = arith.negf %109 : vector<8x128xf32>
    %111 = math.exp %110 : vector<8x128xf32>
    %cst_33 = arith.constant 1.000000e+00 : f32
    %112 = vector.broadcast %cst_33 : f32 to vector<8x128xf32>
    %113 = arith.addf %112, %111 : vector<8x128xf32>
    %114 = arith.divf %112, %113 : vector<8x128xf32>
    %115 = arith.addf %104, %107 : vector<8x128xf32>
    %116 = arith.negf %115 : vector<8x128xf32>
    %117 = math.exp %116 : vector<8x128xf32>
    %cst_34 = arith.constant 1.000000e+00 : f32
    %118 = vector.broadcast %cst_34 : f32 to vector<8x128xf32>
    %119 = arith.addf %118, %117 : vector<8x128xf32>
    %120 = arith.divf %118, %119 : vector<8x128xf32>
    %121 = vector.broadcast %7 : vector<1x128xf32> to vector<8x128xf32>
    %122 = arith.addf %108, %121 : vector<8x128xf32>
    %123 = arith.mulf %114, %122 : vector<8x128xf32>
    %124 = arith.addf %105, %123 : vector<8x128xf32>
    %125 = math.tanh %124 : vector<8x128xf32>
    %126 = arith.subf %98, %125 : vector<8x128xf32>
    %127 = arith.mulf %120, %126 : vector<8x128xf32>
    %128 = arith.addf %125, %127 : vector<8x128xf32>
    %c32 = arith.constant 32 : index
    %c0_35 = arith.constant 0 : index
    %129 = vector.load %arg10[%c32, %c0_35] : memref<64x384xf32, #tpu.memory_space<vmem>>, vector<8x384xf32>
    %130 = arith.truncf %128 : vector<8x128xf32> to vector<8x128xbf16>
    %c0_36 = arith.constant 0 : index
    %c0_37 = arith.constant 0 : index
    %131 = vector.load %arg2[%c0_36, %c0_37] : memref<128x384xbf16, #tpu.memory_space<vmem>>, vector<128x384xbf16>
    %cst_38 = arith.constant dense<0.000000e+00> : vector<8x384xf32>
    %132 = tpu.matmul %130, %131, %cst_38 {dimension_numbers = #tpu.dot_dimension_numbers<[1], [0], [0], [1], [0, 0, 1, 1], [], []>} : vector<8x128xbf16>, vector<128x384xbf16>, vector<8x384xf32> -> vector<8x384xf32>
    %133 = vector.extract_strided_slice %129 {offsets = [0, 0], sizes = [8, 128], strides = [1, 1]} : vector<8x384xf32> to vector<8x128xf32>
    %134 = vector.extract_strided_slice %129 {offsets = [0, 128], sizes = [8, 128], strides = [1, 1]} : vector<8x384xf32> to vector<8x128xf32>
    %135 = vector.extract_strided_slice %129 {offsets = [0, 256], sizes = [8, 128], strides = [1, 1]} : vector<8x384xf32> to vector<8x128xf32>
    %136 = vector.extract_strided_slice %132 {offsets = [0, 0], sizes = [8, 128], strides = [1, 1]} : vector<8x384xf32> to vector<8x128xf32>
    %137 = vector.extract_strided_slice %132 {offsets = [0, 128], sizes = [8, 128], strides = [1, 1]} : vector<8x384xf32> to vector<8x128xf32>
    %138 = vector.extract_strided_slice %132 {offsets = [0, 256], sizes = [8, 128], strides = [1, 1]} : vector<8x384xf32> to vector<8x128xf32>
    %139 = arith.addf %133, %136 : vector<8x128xf32>
    %140 = arith.negf %139 : vector<8x128xf32>
    %141 = math.exp %140 : vector<8x128xf32>
    %cst_39 = arith.constant 1.000000e+00 : f32
    %142 = vector.broadcast %cst_39 : f32 to vector<8x128xf32>
    %143 = arith.addf %142, %141 : vector<8x128xf32>
    %144 = arith.divf %142, %143 : vector<8x128xf32>
    %145 = arith.addf %134, %137 : vector<8x128xf32>
    %146 = arith.negf %145 : vector<8x128xf32>
    %147 = math.exp %146 : vector<8x128xf32>
    %cst_40 = arith.constant 1.000000e+00 : f32
    %148 = vector.broadcast %cst_40 : f32 to vector<8x128xf32>
    %149 = arith.addf %148, %147 : vector<8x128xf32>
    %150 = arith.divf %148, %149 : vector<8x128xf32>
    %151 = vector.broadcast %7 : vector<1x128xf32> to vector<8x128xf32>
    %152 = arith.addf %138, %151 : vector<8x128xf32>
    %153 = arith.mulf %144, %152 : vector<8x128xf32>
    %154 = arith.addf %135, %153 : vector<8x128xf32>
    %155 = math.tanh %154 : vector<8x128xf32>
    %156 = arith.subf %128, %155 : vector<8x128xf32>
    %157 = arith.mulf %150, %156 : vector<8x128xf32>
    %158 = arith.addf %155, %157 : vector<8x128xf32>
    %c40 = arith.constant 40 : index
    %c0_41 = arith.constant 0 : index
    %159 = vector.load %arg10[%c40, %c0_41] : memref<64x384xf32, #tpu.memory_space<vmem>>, vector<8x384xf32>
    %160 = arith.truncf %158 : vector<8x128xf32> to vector<8x128xbf16>
    %c0_42 = arith.constant 0 : index
    %c0_43 = arith.constant 0 : index
    %161 = vector.load %arg2[%c0_42, %c0_43] : memref<128x384xbf16, #tpu.memory_space<vmem>>, vector<128x384xbf16>
    %cst_44 = arith.constant dense<0.000000e+00> : vector<8x384xf32>
    %162 = tpu.matmul %160, %161, %cst_44 {dimension_numbers = #tpu.dot_dimension_numbers<[1], [0], [0], [1], [0, 0, 1, 1], [], []>} : vector<8x128xbf16>, vector<128x384xbf16>, vector<8x384xf32> -> vector<8x384xf32>
    %163 = vector.extract_strided_slice %159 {offsets = [0, 0], sizes = [8, 128], strides = [1, 1]} : vector<8x384xf32> to vector<8x128xf32>
    %164 = vector.extract_strided_slice %159 {offsets = [0, 128], sizes = [8, 128], strides = [1, 1]} : vector<8x384xf32> to vector<8x128xf32>
    %165 = vector.extract_strided_slice %159 {offsets = [0, 256], sizes = [8, 128], strides = [1, 1]} : vector<8x384xf32> to vector<8x128xf32>
    %166 = vector.extract_strided_slice %162 {offsets = [0, 0], sizes = [8, 128], strides = [1, 1]} : vector<8x384xf32> to vector<8x128xf32>
    %167 = vector.extract_strided_slice %162 {offsets = [0, 128], sizes = [8, 128], strides = [1, 1]} : vector<8x384xf32> to vector<8x128xf32>
    %168 = vector.extract_strided_slice %162 {offsets = [0, 256], sizes = [8, 128], strides = [1, 1]} : vector<8x384xf32> to vector<8x128xf32>
    %169 = arith.addf %163, %166 : vector<8x128xf32>
    %170 = arith.negf %169 : vector<8x128xf32>
    %171 = math.exp %170 : vector<8x128xf32>
    %cst_45 = arith.constant 1.000000e+00 : f32
    %172 = vector.broadcast %cst_45 : f32 to vector<8x128xf32>
    %173 = arith.addf %172, %171 : vector<8x128xf32>
    %174 = arith.divf %172, %173 : vector<8x128xf32>
    %175 = arith.addf %164, %167 : vector<8x128xf32>
    %176 = arith.negf %175 : vector<8x128xf32>
    %177 = math.exp %176 : vector<8x128xf32>
    %cst_46 = arith.constant 1.000000e+00 : f32
    %178 = vector.broadcast %cst_46 : f32 to vector<8x128xf32>
    %179 = arith.addf %178, %177 : vector<8x128xf32>
    %180 = arith.divf %178, %179 : vector<8x128xf32>
    %181 = vector.broadcast %7 : vector<1x128xf32> to vector<8x128xf32>
    %182 = arith.addf %168, %181 : vector<8x128xf32>
    %183 = arith.mulf %174, %182 : vector<8x128xf32>
    %184 = arith.addf %165, %183 : vector<8x128xf32>
    %185 = math.tanh %184 : vector<8x128xf32>
    %186 = arith.subf %158, %185 : vector<8x128xf32>
    %187 = arith.mulf %180, %186 : vector<8x128xf32>
    %188 = arith.addf %185, %187 : vector<8x128xf32>
    %c48 = arith.constant 48 : index
    %c0_47 = arith.constant 0 : index
    %189 = vector.load %arg10[%c48, %c0_47] : memref<64x384xf32, #tpu.memory_space<vmem>>, vector<8x384xf32>
    %190 = arith.truncf %188 : vector<8x128xf32> to vector<8x128xbf16>
    %c0_48 = arith.constant 0 : index
    %c0_49 = arith.constant 0 : index
    %191 = vector.load %arg2[%c0_48, %c0_49] : memref<128x384xbf16, #tpu.memory_space<vmem>>, vector<128x384xbf16>
    %cst_50 = arith.constant dense<0.000000e+00> : vector<8x384xf32>
    %192 = tpu.matmul %190, %191, %cst_50 {dimension_numbers = #tpu.dot_dimension_numbers<[1], [0], [0], [1], [0, 0, 1, 1], [], []>} : vector<8x128xbf16>, vector<128x384xbf16>, vector<8x384xf32> -> vector<8x384xf32>
    %193 = vector.extract_strided_slice %189 {offsets = [0, 0], sizes = [8, 128], strides = [1, 1]} : vector<8x384xf32> to vector<8x128xf32>
    %194 = vector.extract_strided_slice %189 {offsets = [0, 128], sizes = [8, 128], strides = [1, 1]} : vector<8x384xf32> to vector<8x128xf32>
    %195 = vector.extract_strided_slice %189 {offsets = [0, 256], sizes = [8, 128], strides = [1, 1]} : vector<8x384xf32> to vector<8x128xf32>
    %196 = vector.extract_strided_slice %192 {offsets = [0, 0], sizes = [8, 128], strides = [1, 1]} : vector<8x384xf32> to vector<8x128xf32>
    %197 = vector.extract_strided_slice %192 {offsets = [0, 128], sizes = [8, 128], strides = [1, 1]} : vector<8x384xf32> to vector<8x128xf32>
    %198 = vector.extract_strided_slice %192 {offsets = [0, 256], sizes = [8, 128], strides = [1, 1]} : vector<8x384xf32> to vector<8x128xf32>
    %199 = arith.addf %193, %196 : vector<8x128xf32>
    %200 = arith.negf %199 : vector<8x128xf32>
    %201 = math.exp %200 : vector<8x128xf32>
    %cst_51 = arith.constant 1.000000e+00 : f32
    %202 = vector.broadcast %cst_51 : f32 to vector<8x128xf32>
    %203 = arith.addf %202, %201 : vector<8x128xf32>
    %204 = arith.divf %202, %203 : vector<8x128xf32>
    %205 = arith.addf %194, %197 : vector<8x128xf32>
    %206 = arith.negf %205 : vector<8x128xf32>
    %207 = math.exp %206 : vector<8x128xf32>
    %cst_52 = arith.constant 1.000000e+00 : f32
    %208 = vector.broadcast %cst_52 : f32 to vector<8x128xf32>
    %209 = arith.addf %208, %207 : vector<8x128xf32>
    %210 = arith.divf %208, %209 : vector<8x128xf32>
    %211 = vector.broadcast %7 : vector<1x128xf32> to vector<8x128xf32>
    %212 = arith.addf %198, %211 : vector<8x128xf32>
    %213 = arith.mulf %204, %212 : vector<8x128xf32>
    %214 = arith.addf %195, %213 : vector<8x128xf32>
    %215 = math.tanh %214 : vector<8x128xf32>
    %216 = arith.subf %188, %215 : vector<8x128xf32>
    %217 = arith.mulf %210, %216 : vector<8x128xf32>
    %218 = arith.addf %215, %217 : vector<8x128xf32>
    %c56 = arith.constant 56 : index
    %c0_53 = arith.constant 0 : index
    %219 = vector.load %arg10[%c56, %c0_53] : memref<64x384xf32, #tpu.memory_space<vmem>>, vector<8x384xf32>
    %220 = arith.truncf %218 : vector<8x128xf32> to vector<8x128xbf16>
    %c0_54 = arith.constant 0 : index
    %c0_55 = arith.constant 0 : index
    %221 = vector.load %arg2[%c0_54, %c0_55] : memref<128x384xbf16, #tpu.memory_space<vmem>>, vector<128x384xbf16>
    %cst_56 = arith.constant dense<0.000000e+00> : vector<8x384xf32>
    %222 = tpu.matmul %220, %221, %cst_56 {dimension_numbers = #tpu.dot_dimension_numbers<[1], [0], [0], [1], [0, 0, 1, 1], [], []>} : vector<8x128xbf16>, vector<128x384xbf16>, vector<8x384xf32> -> vector<8x384xf32>
    %223 = vector.extract_strided_slice %219 {offsets = [0, 0], sizes = [8, 128], strides = [1, 1]} : vector<8x384xf32> to vector<8x128xf32>
    %224 = vector.extract_strided_slice %219 {offsets = [0, 128], sizes = [8, 128], strides = [1, 1]} : vector<8x384xf32> to vector<8x128xf32>
    %225 = vector.extract_strided_slice %219 {offsets = [0, 256], sizes = [8, 128], strides = [1, 1]} : vector<8x384xf32> to vector<8x128xf32>
    %226 = vector.extract_strided_slice %222 {offsets = [0, 0], sizes = [8, 128], strides = [1, 1]} : vector<8x384xf32> to vector<8x128xf32>
    %227 = vector.extract_strided_slice %222 {offsets = [0, 128], sizes = [8, 128], strides = [1, 1]} : vector<8x384xf32> to vector<8x128xf32>
    %228 = vector.extract_strided_slice %222 {offsets = [0, 256], sizes = [8, 128], strides = [1, 1]} : vector<8x384xf32> to vector<8x128xf32>
    %229 = arith.addf %223, %226 : vector<8x128xf32>
    %230 = arith.negf %229 : vector<8x128xf32>
    %231 = math.exp %230 : vector<8x128xf32>
    %cst_57 = arith.constant 1.000000e+00 : f32
    %232 = vector.broadcast %cst_57 : f32 to vector<8x128xf32>
    %233 = arith.addf %232, %231 : vector<8x128xf32>
    %234 = arith.divf %232, %233 : vector<8x128xf32>
    %235 = arith.addf %224, %227 : vector<8x128xf32>
    %236 = arith.negf %235 : vector<8x128xf32>
    %237 = math.exp %236 : vector<8x128xf32>
    %cst_58 = arith.constant 1.000000e+00 : f32
    %238 = vector.broadcast %cst_58 : f32 to vector<8x128xf32>
    %239 = arith.addf %238, %237 : vector<8x128xf32>
    %240 = arith.divf %238, %239 : vector<8x128xf32>
    %241 = vector.broadcast %7 : vector<1x128xf32> to vector<8x128xf32>
    %242 = arith.addf %228, %241 : vector<8x128xf32>
    %243 = arith.mulf %234, %242 : vector<8x128xf32>
    %244 = arith.addf %225, %243 : vector<8x128xf32>
    %245 = math.tanh %244 : vector<8x128xf32>
    %246 = arith.subf %218, %245 : vector<8x128xf32>
    %247 = arith.mulf %240, %246 : vector<8x128xf32>
    %248 = arith.addf %245, %247 : vector<8x128xf32>
    %249 = arith.truncf %248 : vector<8x128xf32> to vector<8x128xbf16>
    %c0_59 = arith.constant 0 : index
    %c0_60 = arith.constant 0 : index
    %250 = vector.load %arg5[%c0_59, %c0_60] : memref<128x128xbf16, #tpu.memory_space<vmem>>, vector<128x128xbf16>
    %cst_61 = arith.constant dense<0.000000e+00> : vector<8x128xf32>
    %251 = tpu.matmul %249, %250, %cst_61 {dimension_numbers = #tpu.dot_dimension_numbers<[1], [0], [0], [1], [0, 0, 1, 1], [], []>} : vector<8x128xbf16>, vector<128x128xbf16>, vector<8x128xf32> -> vector<8x128xf32>
    %c0_62 = arith.constant 0 : index
    %c0_63 = arith.constant 0 : index
    %252 = vector.load %arg6[%c0_62, %c0_63] : memref<1x128xf32, #tpu.memory_space<vmem>>, vector<1x128xf32>
    %253 = vector.broadcast %252 : vector<1x128xf32> to vector<8x128xf32>
    %254 = arith.addf %251, %253 : vector<8x128xf32>
    %255 = arith.truncf %254 : vector<8x128xf32> to vector<8x128xbf16>
    %c0_64 = arith.constant 0 : index
    %c0_65 = arith.constant 0 : index
    %256 = vector.load %arg7[%c0_64, %c0_65] : memref<128x128xbf16, #tpu.memory_space<vmem>>, vector<128x128xbf16>
    %cst_66 = arith.constant dense<0.000000e+00> : vector<8x128xf32>
    %257 = tpu.matmul %255, %256, %cst_66 {dimension_numbers = #tpu.dot_dimension_numbers<[1], [0], [0], [1], [0, 0, 1, 1], [], []>} : vector<8x128xbf16>, vector<128x128xbf16>, vector<8x128xf32> -> vector<8x128xf32>
    %c0_67 = arith.constant 0 : index
    %c0_68 = arith.constant 0 : index
    %258 = vector.load %arg8[%c0_67, %c0_68] : memref<1x128xf32, #tpu.memory_space<vmem>>, vector<1x128xf32>
    %259 = vector.broadcast %258 : vector<1x128xf32> to vector<8x128xf32>
    %260 = arith.addf %257, %259 : vector<8x128xf32>
    %261 = arith.negf %260 : vector<8x128xf32>
    %262 = math.exp %261 : vector<8x128xf32>
    %cst_69 = arith.constant 1.000000e+00 : f32
    %263 = vector.broadcast %cst_69 : f32 to vector<8x128xf32>
    %264 = arith.addf %263, %262 : vector<8x128xf32>
    %265 = arith.divf %263, %264 : vector<8x128xf32>
    %c0_70 = arith.constant 0 : index
    %c0_71 = arith.constant 0 : index
    %266 = vector.load %arg9[%c0_70, %c0_71] : memref<8x128xf32, #tpu.memory_space<vmem>>, vector<8x128xf32>
    tpu.vector_store %arg9[%c0_70, %c0_71], %265 {strides = array<i32>} : memref<8x128xf32, #tpu.memory_space<vmem>>, vector<8x128xf32>,
    return
  }
}

</mosaic_0001>

<llo_original>
// kernel: gru_model_forward.1
$region0: #{gru_model_forward.1}
  #allocation0 [shape = 'u32[]', space=smem, size = 0x4, offset = 0x4, fixed_abs, tag = 'smem constant byte address 0x4 - core index']
  #allocation1 [shape = 'u32[144,128]{1,0:T(1,128)}', space=vmem, size = 0x12000, scoped, tag = 'internal scratch']
  #allocation2 [shape = 'f32[64,384]{1,0:T(8,128)}', space=vmem, size = 0x18000, scoped, tag = 'scratch operand']
  %s0 = inlined_call_operand.vmem [shape: bf16[64,128], index: 0, kind: input, shape index: {}]
  %s1 = inlined_call_operand.hbm [shape: bf16[128,384], index: 1, kind: input, shape index: {}]
  %s2 = inlined_call_operand.hbm [shape: bf16[128,384], index: 2, kind: input, shape index: {}]
  %s3 = inlined_call_operand.vmem [shape: f32[1,384], index: 3, kind: input, shape index: {}]
  %s4 = inlined_call_operand.vmem [shape: f32[1,128], index: 4, kind: input, shape index: {}]
  %s5 = inlined_call_operand.vmem [shape: bf16[128,128], index: 5, kind: input, shape index: {}]
  %s6 = inlined_call_operand.vmem [shape: f32[1,128], index: 6, kind: input, shape index: {}]
  %s7 = inlined_call_operand.hbm [shape: bf16[128,128], index: 7, kind: input, shape index: {}]
  %s8 = inlined_call_operand.vmem [shape: f32[1,128], index: 8, kind: input, shape index: {}]
  %s9 = inlined_call_operand.vmem [shape: f32[8,128], index: 9, kind: output, shape index: {}]
  %s10 = sld [smem:[#allocation0]]
  $region58: #{gru_model_forward.1} parent=0
    _
  %s12 = ssub.s32 1, %s10
  %s13 = scalar_select 0, %s12, %s10
  $region1: #{gru_model_forward.1} parent=0
    #allocation3 [shape = 'u8[98304]{0}', space=vmem, size = 0x18000, scoped, tag = 'input window, operand 1, single buffered']
    #allocation4 [shape = 's32[1]{0}', space=sflag, size = 0x4, scoped, tag = 'scoped memory for gru_model_forward.1']
    #allocation5 [shape = 'u8[98304]{0}', space=vmem, size = 0x18000, scoped, tag = 'input window, operand 2, single buffered']
    #allocation6 [shape = 's32[1]{0}', space=sflag, size = 0x4, scoped, tag = 'scoped memory for gru_model_forward.1']
    #allocation7 [shape = 'u8[32768]{0}', space=vmem, size = 0x8000, scoped, tag = 'input window, operand 7, single buffered']
    %14 = vsyncpa [#allocation4], 0
    %15 = vsyncpa [#allocation6], 0
    // Predicated region
    $region2: #{gru_model_forward.1} parent=1 // pred_check
      _
    $region3: #{gru_model_forward.1} parent=1 // pred_check_branch
      %17 = sbr.rel (0) target = $region5
    $region4: #{gru_model_forward.1} parent=1 // pred_region
      _
    $region5: #{gru_model_forward.1} parent=1 // pred_fallthru
      _
    // Predicated region
    $region6: #{gru_model_forward.1} parent=1 // pred_check
      _
    $region7: #{gru_model_forward.1} parent=1 // pred_check_branch
      %19 = sbr.rel (0) target = $region9
    $region8: #{gru_model_forward.1} parent=1 // pred_region
      %s21 = ssub.s32 3072, 3072
      %22 = vsyncadd [#allocation4], %s21
      %s23 = sshll.u32 [#allocation3], 4
      %s24 = int_to_ptr.vmem [resolvable:$true] %s23
      %29 = dma.hbm_to_vmem [thread:$0]  %s1, 3072, %s24, [#allocation4], 192, 192, 12
    $region9: #{gru_model_forward.1} parent=1 // pred_fallthru
      _
    // Predicated region
    $region10: #{gru_model_forward.1} parent=1 // pred_check
      _
    $region11: #{gru_model_forward.1} parent=1 // pred_check_branch
      %31 = sbr.rel (0) target = $region13
    $region12: #{gru_model_forward.1} parent=1 // pred_region
      %s33 = ssub.s32 3072, 3072
      %34 = vsyncadd [#allocation6], %s33
      %s35 = sshll.u32 [#allocation5], 4
      %s36 = int_to_ptr.vmem [resolvable:$true] %s35
      %41 = dma.hbm_to_vmem [thread:$0]  %s2, 3072, %s36, [#allocation6], 192, 192, 12
    $region13: #{gru_model_forward.1} parent=1 // pred_fallthru
      _
    // Predicated region
    $region14: #{gru_model_forward.1} parent=1 // pred_check
      _
    $region15: #{gru_model_forward.1} parent=1 // pred_check_branch
      %43 = sbr.rel (0) target = $region17
    $region16: #{gru_model_forward.1} parent=1 // pred_region
      _
    $region17: #{gru_model_forward.1} parent=1 // pred_fallthru
      _
    // Predicated region
    $region18: #{gru_model_forward.1} parent=1 // pred_check
      _
    $region19: #{gru_model_forward.1} parent=1 // pred_check_branch
      %45 = sbr.rel (0) target = $region21
    $region20: #{gru_model_forward.1} parent=1 // pred_region
      _
    $region21: #{gru_model_forward.1} parent=1 // pred_fallthru
      _
    // Predicated region
    $region22: #{gru_model_forward.1} parent=1 // pred_check
      _
    $region23: #{gru_model_forward.1} parent=1 // pred_check_branch
      %47 = sbr.rel (0) target = $region25
    $region24: #{gru_model_forward.1} parent=1 // pred_region
      _
    $region25: #{gru_model_forward.1} parent=1 // pred_fallthru
      _
    // Predicated region
    $region26: #{gru_model_forward.1} parent=1 // pred_check
      _
    $region27: #{gru_model_forward.1} parent=1 // pred_check_branch
      %49 = sbr.rel (0) target = $region29
    $region28: #{gru_model_forward.1} parent=1 // pred_region
      _
    $region29: #{gru_model_forward.1} parent=1 // pred_fallthru
      _
    // Predicated region
    $region30: #{gru_model_forward.1} parent=1 // pred_check
      _
    $region31: #{gru_model_forward.1} parent=1 // pred_check_branch
      %51 = sbr.rel (0) target = $region33
    $region32: #{gru_model_forward.1} parent=1 // pred_region
      %s53 = ssub.s32 1024, 1024
      %54 = vsyncadd [#allocation6], %s53
      %s55 = sshll.u32 [#allocation7], 4
      %s56 = int_to_ptr.vmem [resolvable:$true] %s55
      %61 = dma.hbm_to_vmem [thread:$0]  %s7, 1024, %s56, [#allocation6], 64, 64, 4
    $region33: #{gru_model_forward.1} parent=1 // pred_fallthru
      _
    // Predicated region
    $region34: #{gru_model_forward.1} parent=1 // pred_check
      _
    $region35: #{gru_model_forward.1} parent=1 // pred_check_branch
      %63 = sbr.rel (0) target = $region37
    $region36: #{gru_model_forward.1} parent=1 // pred_region
      _
    $region37: #{gru_model_forward.1} parent=1 // pred_fallthru
      _
    // Predicated region
    $region38: #{gru_model_forward.1} parent=1 // pred_check
      _
    $region39: #{gru_model_forward.1} parent=1 // pred_check_branch
      %65 = sbr.rel (0) target = $region41
    $region40: #{gru_model_forward.1} parent=1 // pred_region
      %66 = dma.done [#allocation4], 3072
    $region41: #{gru_model_forward.1} parent=1 // pred_fallthru
      _
    // Predicated region
    $region42: #{gru_model_forward.1} parent=1 // pred_check
      _
    $region43: #{gru_model_forward.1} parent=1 // pred_check_branch
      %68 = sbr.rel (0) target = $region45
    $region44: #{gru_model_forward.1} parent=1 // pred_region
      %69 = dma.done [#allocation6], 3072
    $region45: #{gru_model_forward.1} parent=1 // pred_fallthru
      _
    // Predicated region
    $region46: #{gru_model_forward.1} parent=1 // pred_check
      _
    $region47: #{gru_model_forward.1} parent=1 // pred_check_branch
      %71 = sbr.rel (0) target = $region49
    $region48: #{gru_model_forward.1} parent=1 // pred_region
      %72 = dma.done [#allocation6], 1024
    $region49: #{gru_model_forward.1} parent=1 // pred_fallthru
      _
    %v74 = vld [vmem:[%s0] sm:$0xf]
    %v75 = vld [vmem:[%s0 + $0x4] sm:$0xf]
    %v76 = vld [vmem:[%s0 + $0x8] sm:$0xf]
    %v77 = vld [vmem:[%s0 + $0xc] sm:$0xf]
    %v78 = vld [vmem:[%s0 + $0x10] sm:$0xf]
    %v79 = vld [vmem:[%s0 + $0x14] sm:$0xf]
    %v80 = vld [vmem:[%s0 + $0x18] sm:$0xf]
    %v81 = vld [vmem:[%s0 + $0x1c] sm:$0xf]
    %v82 = vld [vmem:[#allocation3] sm:$0xff]
    %v83 = vld [vmem:[#allocation3 + $0x8] sm:$0xf]
    %v84 = vld [vmem:[#allocation3 + $0xc] sm:$0xff]
    %v85 = vld [vmem:[#allocation3 + $0x14] sm:$0xf]
    %v86 = vld [vmem:[#allocation3 + $0x18] sm:$0xff]
    %v87 = vld [vmem:[#allocation3 + $0x20] sm:$0xf]
    %v88 = vld [vmem:[#allocation3 + $0x24] sm:$0xff]
    %v89 = vld [vmem:[#allocation3 + $0x2c] sm:$0xf]
    %v90 = vld [vmem:[#allocation3 + $0x30] sm:$0xff]
    %v91 = vld [vmem:[#allocation3 + $0x38] sm:$0xf]
    %v92 = vld [vmem:[#allocation3 + $0x3c] sm:$0xff]
    %v93 = vld [vmem:[#allocation3 + $0x44] sm:$0xf]
    %v94 = vld [vmem:[#allocation3 + $0x48] sm:$0xff]
    %v95 = vld [vmem:[#allocation3 + $0x50] sm:$0xf]
    %v96 = vld [vmem:[#allocation3 + $0x54] sm:$0xff]
    %v97 = vld [vmem:[#allocation3 + $0x5c] sm:$0xf]
    %v98 = vld [vmem:[#allocation3 + $0x60] sm:$0xff]
    %v99 = vld [vmem:[#allocation3 + $0x68] sm:$0xf]
    %v100 = vld [vmem:[#allocation3 + $0x6c] sm:$0xff]
    %v101 = vld [vmem:[#allocation3 + $0x74] sm:$0xf]
    %v102 = vld [vmem:[#allocation3 + $0x78] sm:$0xff]
    %v103 = vld [vmem:[#allocation3 + $0x80] sm:$0xf]
    %v104 = vld [vmem:[#allocation3 + $0x84] sm:$0xff]
    %v105 = vld [vmem:[#allocation3 + $0x8c] sm:$0xf]
    %v106 = vld [vmem:[#allocation3 + $0x90] sm:$0xff]
    %v107 = vld [vmem:[#allocation3 + $0x98] sm:$0xf]
    %v108 = vld [vmem:[#allocation3 + $0x9c] sm:$0xff]
    %v109 = vld [vmem:[#allocation3 + $0xa4] sm:$0xf]
    %v110 = vld [vmem:[#allocation3 + $0xa8] sm:$0xff]
    %v111 = vld [vmem:[#allocation3 + $0xb0] sm:$0xf]
    %v112 = vld [vmem:[#allocation3 + $0xb4] sm:$0xff]
    %v113 = vld [vmem:[#allocation3 + $0xbc] sm:$0xf]
    %v114 = vld [vmem:[%s3] sm:$0x7]
    %v116 = vlaneseq
    %v117 = vshrl.u32 %v116, 7
    %v118 = vsub.s32 0, %v117
    %v119 = vrot.slane %v114, %v118
    %v120 = vlaneseq
    %v121 = vshrl.u32 %v120, 7
    %v122 = vsub.s32 1, %v121
    %v123 = vrot.slane %v114, %v122
    %v124 = vlaneseq
    %v125 = vshrl.u32 %v124, 7
    %v126 = vsub.s32 2, %v125
    %v127 = vrot.slane %v114, %v126
    %v139 = vunpack.c.l.b16 %v74
    %v140 = vunpack.c.l.b16 %v75
    %v141 = vunpack.c.l.b16 %v76
    %v142 = vunpack.c.l.b16 %v77
    %v143 = vunpack.c.l.b16 %v78
    %v144 = vunpack.c.l.b16 %v79
    %v145 = vunpack.c.l.b16 %v80
    %v146 = vunpack.c.l.b16 %v81
    %v147 = vpack.c.b16 %v140, %v139
    %v148 = vpack.c.b16 %v142, %v141
    %v149 = vpack.c.b16 %v144, %v143
    %v150 = vpack.c.b16 %v146, %v145
    %v187 = vunpack.c.l.b16 %v82
    %v188 = vunpack.c.h.b16 %v82
    %v189 = vunpack.c.l.b16 %v83
    %v190 = vunpack.c.l.b16 %v84
    %v191 = vunpack.c.h.b16 %v84
    %v192 = vunpack.c.l.b16 %v85
    %v193 = vunpack.c.l.b16 %v86
    %v194 = vunpack.c.h.b16 %v86
    %v195 = vunpack.c.l.b16 %v87
    %v196 = vunpack.c.l.b16 %v88
    %v197 = vunpack.c.h.b16 %v88
    %v198 = vunpack.c.l.b16 %v89
    %v199 = vunpack.c.l.b16 %v90
    %v200 = vunpack.c.h.b16 %v90
    %v201 = vunpack.c.l.b16 %v91
    %v202 = vunpack.c.l.b16 %v92
    %v203 = vunpack.c.h.b16 %v92
    %v204 = vunpack.c.l.b16 %v93
    %v205 = vunpack.c.l.b16 %v94
    %v206 = vunpack.c.h.b16 %v94
    %v207 = vunpack.c.l.b16 %v95
    %v208 = vunpack.c.l.b16 %v96
    %v209 = vunpack.c.h.b16 %v96
    %v210 = vunpack.c.l.b16 %v97
    %v211 = vunpack.c.l.b16 %v98
    %v212 = vunpack.c.h.b16 %v98
    %v213 = vunpack.c.l.b16 %v99
    %v214 = vunpack.c.l.b16 %v100
    %v215 = vunpack.c.h.b16 %v100
    %v216 = vunpack.c.l.b16 %v101
    %v217 = vunpack.c.l.b16 %v102
    %v218 = vunpack.c.h.b16 %v102
    %v219 = vunpack.c.l.b16 %v103
    %v220 = vunpack.c.l.b16 %v104
    %v221 = vunpack.c.h.b16 %v104
    %v222 = vunpack.c.l.b16 %v105
    %v223 = vunpack.c.l.b16 %v106
    %v224 = vunpack.c.h.b16 %v106
    %v225 = vunpack.c.l.b16 %v107
    %v226 = vunpack.c.l.b16 %v108
    %v227 = vunpack.c.h.b16 %v108
    %v228 = vunpack.c.l.b16 %v109
    %v229 = vunpack.c.l.b16 %v110
    %v230 = vunpack.c.h.b16 %v110
    %v231 = vunpack.c.l.b16 %v111
    %v232 = vunpack.c.l.b16 %v112
    %v233 = vunpack.c.h.b16 %v112
    %v234 = vunpack.c.l.b16 %v113
    %v235 = vpack.c.b16 %v190, %v187
    %v236 = vpack.c.b16 %v191, %v188
    %v237 = vpack.c.b16 %v192, %v189
    %v238 = vpack.c.b16 %v196, %v193
    %v239 = vpack.c.b16 %v197, %v194
    %v240 = vpack.c.b16 %v198, %v195
    %v241 = vpack.c.b16 %v202, %v199
    %v242 = vpack.c.b16 %v203, %v200
    %v243 = vpack.c.b16 %v204, %v201
    %v244 = vpack.c.b16 %v208, %v205
    %v245 = vpack.c.b16 %v209, %v206
    %v246 = vpack.c.b16 %v210, %v207
    %v247 = vpack.c.b16 %v214, %v211
    %v248 = vpack.c.b16 %v215, %v212
    %v249 = vpack.c.b16 %v216, %v213
    %v250 = vpack.c.b16 %v220, %v217
    %v251 = vpack.c.b16 %v221, %v218
    %v252 = vpack.c.b16 %v222, %v219
    %v253 = vpack.c.b16 %v226, %v223
    %v254 = vpack.c.b16 %v227, %v224
    %v255 = vpack.c.b16 %v228, %v225
    %v256 = vpack.c.b16 %v232, %v229
    %v257 = vpack.c.b16 %v233, %v230
    %v258 = vpack.c.b16 %v234, %v231
    %283 = vmatprep.subr.bf16.mxu0 %v236
    %284 = vmatpush1.bf16.msra.mxu0 %v235
    %285 = vmatprep.subr.bf16.mxu0 %v239
    %286 = vmatpush1.bf16.msra.mxu0 %v238
    %287 = vmatprep.subr.bf16.mxu0 %v242
    %288 = vmatpush1.bf16.msra.mxu0 %v241
    %289 = vmatprep.subr.bf16.mxu0 %v245
    %290 = vmatpush1.bf16.msra.mxu0 %v244
    %291 = vmatprep.subr.bf16.mxu0 %v248
    %292 = vmatpush1.bf16.msra.mxu0 %v247
    %293 = vmatprep.subr.bf16.mxu0 %v251
    %294 = vmatpush1.bf16.msra.mxu0 %v250
    %295 = vmatprep.subr.bf16.mxu0 %v254
    %296 = vmatpush1.bf16.msra.mxu0 %v253
    %297 = vmatprep.subr.bf16.mxu0 %v257
    %298 = vmatpush1.bf16.msra.mxu0 %v256
    %299 = vmatprep.subr.bf16.mxu0 0
    %300 = vmatpush1.bf16.msra.mxu0 0
    %301 = vmatprep.subr.bf16.mxu0 0
    %302 = vmatpush1.bf16.msra.mxu0 0
    %303 = vmatprep.subr.bf16.mxu0 0
    %304 = vmatpush1.bf16.msra.mxu0 0
    %305 = vmatprep.subr.bf16.mxu0 0
    %306 = vmatpush1.bf16.msra.mxu0 0
    %307 = vmatprep.subr.bf16.mxu0 0
    %308 = vmatpush1.bf16.msra.mxu0 0
    %309 = vmatprep.subr.bf16.mxu0 0
    %310 = vmatpush1.bf16.msra.mxu0 0
    %311 = vmatprep.subr.bf16.mxu0 0
    %312 = vmatpush1.bf16.msra.mxu0 0
    %313 = vmatprep.subr.bf16.mxu0 0
    %314 = vmatpush1.bf16.msra.mxu0 0
    %315 = vmatprep.mubr.bf16.mxu0 0
    %316 = vmatmul.mubr.bf16.gmra.mrb[0].mxu0 %v147
    %v317 = vpop.f32.mrb[0].mxu0
    %v318 = vadd.f32 %v119, %v317
    %v319 = vpop.f32.mrb[0].mxu0
    %v320 = vadd.f32 %v123, %v319
    %v321 = vpop.f32.mrb[0].mxu0
    %v322 = vadd.f32 %v119, %v321
    %v323 = vpop.f32.mrb[0].mxu0
    %v324 = vadd.f32 %v123, %v323
    %325 = vmatprep.mubr.bf16.mxu0 0
    %326 = vmatmul.mubr.bf16.gmra.mrb[0].mxu0 %v148
    %v327 = vpop.f32.mrb[0].mxu0
    %v328 = vadd.f32 %v119, %v327
    %v329 = vpop.f32.mrb[0].mxu0
    %v330 = vadd.f32 %v123, %v329
    %v331 = vpop.f32.mrb[0].mxu0
    %v332 = vadd.f32 %v119, %v331
    %v333 = vpop.f32.mrb[0].mxu0
    %v334 = vadd.f32 %v123, %v333
    %335 = vmatprep.mubr.bf16.mxu0 0
    %336 = vmatmul.mubr.bf16.gmra.mrb[0].mxu0 %v149
    %v337 = vpop.f32.mrb[0].mxu0
    %v338 = vadd.f32 %v119, %v337
    %v339 = vpop.f32.mrb[0].mxu0
    %v340 = vadd.f32 %v123, %v339
    %v341 = vpop.f32.mrb[0].mxu0
    %v342 = vadd.f32 %v119, %v341
    %v343 = vpop.f32.mrb[0].mxu0
    %v344 = vadd.f32 %v123, %v343
    %345 = vmatprep.mubr.bf16.mxu0 0
    %346 = vmatmul.mubr.bf16.gmra.mrb[0].mxu0 %v150
    %v347 = vpop.f32.mrb[0].mxu0
    %v348 = vadd.f32 %v119, %v347
    %v349 = vpop.f32.mrb[0].mxu0
    %v350 = vadd.f32 %v123, %v349
    %v351 = vpop.f32.mrb[0].mxu0
    %v352 = vadd.f32 %v119, %v351
    %v353 = vpop.f32.mrb[0].mxu0
    %v354 = vadd.f32 %v123, %v353
    %355 = vdwg.mxu0
    %356 = vmatprep.subr.bf16.mxu0 0
    %357 = vmatpush1.bf16.msra.mxu0 %v237
    %358 = vmatprep.subr.bf16.mxu0 0
    %359 = vmatpush1.bf16.msra.mxu0 %v240
    %360 = vmatprep.subr.bf16.mxu0 0
    %361 = vmatpush1.bf16.msra.mxu0 %v243
    %362 = vmatprep.subr.bf16.mxu0 0
    %363 = vmatpush1.bf16.msra.mxu0 %v246
    %364 = vmatprep.subr.bf16.mxu0 0
    %365 = vmatpush1.bf16.msra.mxu0 %v249
    %366 = vmatprep.subr.bf16.mxu0 0
    %367 = vmatpush1.bf16.msra.mxu0 %v252
    %368 = vmatprep.subr.bf16.mxu0 0
    %369 = vmatpush1.bf16.msra.mxu0 %v255
    %370 = vmatprep.subr.bf16.mxu0 0
    %371 = vmatpush1.bf16.msra.mxu0 %v258
    %372 = vmatprep.subr.bf16.mxu0 0
    %373 = vmatpush1.bf16.msra.mxu0 0
    %374 = vmatprep.subr.bf16.mxu0 0
    %375 = vmatpush1.bf16.msra.mxu0 0
    %376 = vmatprep.subr.bf16.mxu0 0
    %377 = vmatpush1.bf16.msra.mxu0 0
    %378 = vmatprep.subr.bf16.mxu0 0
    %379 = vmatpush1.bf16.msra.mxu0 0
    %380 = vmatprep.subr.bf16.mxu0 0
    %381 = vmatpush1.bf16.msra.mxu0 0
    %382 = vmatprep.subr.bf16.mxu0 0
    %383 = vmatpush1.bf16.msra.mxu0 0
    %384 = vmatprep.subr.bf16.mxu0 0
    %385 = vmatpush1.bf16.msra.mxu0 0
    %386 = vmatprep.subr.bf16.mxu0 0
    %387 = vmatpush1.bf16.msra.mxu0 0
    %388 = vmatprep.mubr.bf16.mxu0 0
    %389 = vmatmul.mubr.bf16.gmra.mrb[0].mxu0 %v147
    %v390 = vpop.f32.mrb[0].mxu0
    %v391 = vadd.f32 %v127, %v390
    %v392 = vpop.f32.mrb[0].mxu0
    %v393 = vpop.f32.mrb[0].mxu0
    %v394 = vadd.f32 %v127, %v393
    %v395 = vpop.f32.mrb[0].mxu0
    %396 = vmatprep.mubr.bf16.mxu0 0
    %397 = vmatmul.mubr.bf16.gmra.mrb[0].mxu0 %v148
    %v398 = vpop.f32.mrb[0].mxu0
    %v399 = vadd.f32 %v127, %v398
    %v400 = vpop.f32.mrb[0].mxu0
    %v401 = vpop.f32.mrb[0].mxu0
    %v402 = vadd.f32 %v127, %v401
    %v403 = vpop.f32.mrb[0].mxu0
    %404 = vmatprep.mubr.bf16.mxu0 0
    %405 = vmatmul.mubr.bf16.gmra.mrb[0].mxu0 %v149
    %v406 = vpop.f32.mrb[0].mxu0
    %v407 = vadd.f32 %v127, %v406
    %v408 = vpop.f32.mrb[0].mxu0
    %v409 = vpop.f32.mrb[0].mxu0
    %v410 = vadd.f32 %v127, %v409
    %v411 = vpop.f32.mrb[0].mxu0
    %412 = vmatprep.mubr.bf16.mxu0 0
    %413 = vmatmul.mubr.bf16.gmra.mrb[0].mxu0 %v150
    %v414 = vpop.f32.mrb[0].mxu0
    %v415 = vadd.f32 %v127, %v414
    %v416 = vpop.f32.mrb[0].mxu0
    %v417 = vpop.f32.mrb[0].mxu0
    %v418 = vadd.f32 %v127, %v417
    %v419 = vpop.f32.mrb[0].mxu0
    %420 = vdwg.mxu0
    %421 = vst [vmem:[#allocation2] sm:$0xff] %v318
    %422 = vst [vmem:[#allocation2 + $0x8] sm:$0xff] %v320
    %423 = vst [vmem:[#allocation2 + $0x10] sm:$0xff] %v391
    %424 = vst [vmem:[#allocation2 + $0x18] sm:$0xff] %v322
    %425 = vst [vmem:[#allocation2 + $0x20] sm:$0xff] %v324
    %426 = vst [vmem:[#allocation2 + $0x28] sm:$0xff] %v394
    %427 = vst [vmem:[#allocation2 + $0x30] sm:$0xff] %v328
    %428 = vst [vmem:[#allocation2 + $0x38] sm:$0xff] %v330
    %429 = vst [vmem:[#allocation2 + $0x40] sm:$0xff] %v399
    %430 = vst [vmem:[#allocation2 + $0x48] sm:$0xff] %v332
    %431 = vst [vmem:[#allocation2 + $0x50] sm:$0xff] %v334
    %432 = vst [vmem:[#allocation2 + $0x58] sm:$0xff] %v402
    %433 = vst [vmem:[#allocation2 + $0x60] sm:$0xff] %v338
    %434 = vst [vmem:[#allocation2 + $0x68] sm:$0xff] %v340
    %435 = vst [vmem:[#allocation2 + $0x70] sm:$0xff] %v407
    %436 = vst [vmem:[#allocation2 + $0x78] sm:$0xff] %v342
    %437 = vst [vmem:[#allocation2 + $0x80] sm:$0xff] %v344
    %438 = vst [vmem:[#allocation2 + $0x88] sm:$0xff] %v410
    %439 = vst [vmem:[#allocation2 + $0x90] sm:$0xff] %v348
    %440 = vst [vmem:[#allocation2 + $0x98] sm:$0xff] %v350
    %441 = vst [vmem:[#allocation2 + $0xa0] sm:$0xff] %v415
    %442 = vst [vmem:[#allocation2 + $0xa8] sm:$0xff] %v352
    %443 = vst [vmem:[#allocation2 + $0xb0] sm:$0xff] %v354
    %444 = vst [vmem:[#allocation2 + $0xb8] sm:$0xff] %v418
    %v445 = vld [vmem:[%s4] sm:$0x1]
    %v446 = vld [vmem:[#allocation2] sm:$0xff]
    %v447 = vld [vmem:[#allocation2 + $0x8] sm:$0xff]
    %v448 = vld [vmem:[#allocation2 + $0x10] sm:$0xff]
    %v449 = vld [vmem:[#allocation5] sm:$0xff]
    %v450 = vld [vmem:[#allocation5 + $0x8] sm:$0xf]
    %v451 = vld [vmem:[#allocation5 + $0xc] sm:$0xff]
    %v452 = vld [vmem:[#allocation5 + $0x14] sm:$0xf]
    %v453 = vld [vmem:[#allocation5 + $0x18] sm:$0xff]
    %v454 = vld [vmem:[#allocation5 + $0x20] sm:$0xf]
    %v455 = vld [vmem:[#allocation5 + $0x24] sm:$0xff]
    %v456 = vld [vmem:[#allocation5 + $0x2c] sm:$0xf]
    %v457 = vld [vmem:[#allocation5 + $0x30] sm:$0xff]
    %v458 = vld [vmem:[#allocation5 + $0x38] sm:$0xf]
    %v459 = vld [vmem:[#allocation5 + $0x3c] sm:$0xff]
    %v460 = vld [vmem:[#allocation5 + $0x44] sm:$0xf]
    %v461 = vld [vmem:[#allocation5 + $0x48] sm:$0xff]
    %v462 = vld [vmem:[#allocation5 + $0x50] sm:$0xf]
    %v463 = vld [vmem:[#allocation5 + $0x54] sm:$0xff]
    %v464 = vld [vmem:[#allocation5 + $0x5c] sm:$0xf]
    %v465 = vld [vmem:[#allocation5 + $0x60] sm:$0xff]
    %v466 = vld [vmem:[#allocation5 + $0x68] sm:$0xf]
    %v467 = vld [vmem:[#allocation5 + $0x6c] sm:$0xff]
    %v468 = vld [vmem:[#allocation5 + $0x74] sm:$0xf]
    %v469 = vld [vmem:[#allocation5 + $0x78] sm:$0xff]
    %v470 = vld [vmem:[#allocation5 + $0x80] sm:$0xf]
    %v471 = vld [vmem:[#allocation5 + $0x84] sm:$0xff]
    %v472 = vld [vmem:[#allocation5 + $0x8c] sm:$0xf]
    %v473 = vld [vmem:[#allocation5 + $0x90] sm:$0xff]
    %v474 = vld [vmem:[#allocation5 + $0x98] sm:$0xf]
    %v475 = vld [vmem:[#allocation5 + $0x9c] sm:$0xff]
    %v476 = vld [vmem:[#allocation5 + $0xa4] sm:$0xf]
    %v477 = vld [vmem:[#allocation5 + $0xa8] sm:$0xff]
    %v478 = vld [vmem:[#allocation5 + $0xb0] sm:$0xf]
    %v479 = vld [vmem:[#allocation5 + $0xb4] sm:$0xff]
    %v480 = vld [vmem:[#allocation5 + $0xbc] sm:$0xf]
    %v513 = vunpack.c.l.b16 %v449
    %v514 = vunpack.c.h.b16 %v449
    %v515 = vunpack.c.l.b16 %v450
    %v516 = vunpack.c.l.b16 %v451
    %v517 = vunpack.c.h.b16 %v451
    %v518 = vunpack.c.l.b16 %v452
    %v519 = vunpack.c.l.b16 %v453
    %v520 = vunpack.c.h.b16 %v453
    %v521 = vunpack.c.l.b16 %v454
    %v522 = vunpack.c.l.b16 %v455
    %v523 = vunpack.c.h.b16 %v455
    %v524 = vunpack.c.l.b16 %v456
    %v525 = vunpack.c.l.b16 %v457
    %v526 = vunpack.c.h.b16 %v457
    %v527 = vunpack.c.l.b16 %v458
    %v528 = vunpack.c.l.b16 %v459
    %v529 = vunpack.c.h.b16 %v459
    %v530 = vunpack.c.l.b16 %v460
    %v531 = vunpack.c.l.b16 %v461
    %v532 = vunpack.c.h.b16 %v461
    %v533 = vunpack.c.l.b16 %v462
    %v534 = vunpack.c.l.b16 %v463
    %v535 = vunpack.c.h.b16 %v463
    %v536 = vunpack.c.l.b16 %v464
    %v537 = vunpack.c.l.b16 %v465
    %v538 = vunpack.c.h.b16 %v465
    %v539 = vunpack.c.l.b16 %v466
    %v540 = vunpack.c.l.b16 %v467
    %v541 = vunpack.c.h.b16 %v467
    %v542 = vunpack.c.l.b16 %v468
    %v543 = vunpack.c.l.b16 %v469
    %v544 = vunpack.c.h.b16 %v469
    %v545 = vunpack.c.l.b16 %v470
    %v546 = vunpack.c.l.b16 %v471
    %v547 = vunpack.c.h.b16 %v471
    %v548 = vunpack.c.l.b16 %v472
    %v549 = vunpack.c.l.b16 %v473
    %v550 = vunpack.c.h.b16 %v473
    %v551 = vunpack.c.l.b16 %v474
    %v552 = vunpack.c.l.b16 %v475
    %v553 = vunpack.c.h.b16 %v475
    %v554 = vunpack.c.l.b16 %v476
    %v555 = vunpack.c.l.b16 %v477
    %v556 = vunpack.c.h.b16 %v477
    %v557 = vunpack.c.l.b16 %v478
    %v558 = vunpack.c.l.b16 %v479
    %v559 = vunpack.c.h.b16 %v479
    %v560 = vunpack.c.l.b16 %v480
    %v561 = vpack.c.b16 %v516, %v513
    %v562 = vpack.c.b16 %v517, %v514
    %v563 = vpack.c.b16 %v518, %v515
    %v564 = vpack.c.b16 %v522, %v519
    %v565 = vpack.c.b16 %v523, %v520
    %v566 = vpack.c.b16 %v524, %v521
    %v567 = vpack.c.b16 %v528, %v525
    %v568 = vpack.c.b16 %v529, %v526
    %v569 = vpack.c.b16 %v530, %v527
    %v570 = vpack.c.b16 %v534, %v531
    %v571 = vpack.c.b16 %v535, %v532
    %v572 = vpack.c.b16 %v536, %v533
    %v573 = vpack.c.b16 %v540, %v537
    %v574 = vpack.c.b16 %v541, %v538
    %v575 = vpack.c.b16 %v542, %v539
    %v576 = vpack.c.b16 %v546, %v543
    %v577 = vpack.c.b16 %v547, %v544
    %v578 = vpack.c.b16 %v548, %v545
    %v579 = vpack.c.b16 %v552, %v549
    %v580 = vpack.c.b16 %v553, %v550
    %v581 = vpack.c.b16 %v554, %v551
    %v582 = vpack.c.b16 %v558, %v555
    %v583 = vpack.c.b16 %v559, %v556
    %v584 = vpack.c.b16 %v560, %v557
    %609 = vmatprep.subr.bf16.mxu0 %v562
    %610 = vmatpush1.bf16.msra.mxu0 %v561
    %611 = vmatprep.subr.bf16.mxu0 %v565
    %612 = vmatpush1.bf16.msra.mxu0 %v564
    %613 = vmatprep.subr.bf16.mxu0 %v568
    %614 = vmatpush1.bf16.msra.mxu0 %v567
    %615 = vmatprep.subr.bf16.mxu0 %v571
    %616 = vmatpush1.bf16.msra.mxu0 %v570
    %617 = vmatprep.subr.bf16.mxu0 %v574
    %618 = vmatpush1.bf16.msra.mxu0 %v573
    %619 = vmatprep.subr.bf16.mxu0 %v577
    %620 = vmatpush1.bf16.msra.mxu0 %v576
    %621 = vmatprep.subr.bf16.mxu0 %v580
    %622 = vmatpush1.bf16.msra.mxu0 %v579
    %623 = vmatprep.subr.bf16.mxu0 %v583
    %624 = vmatpush1.bf16.msra.mxu0 %v582
    %625 = vmatprep.subr.bf16.mxu0 0
    %626 = vmatpush1.bf16.msra.mxu0 0
    %627 = vmatprep.subr.bf16.mxu0 0
    %628 = vmatpush1.bf16.msra.mxu0 0
    %629 = vmatprep.subr.bf16.mxu0 0
    %630 = vmatpush1.bf16.msra.mxu0 0
    %631 = vmatprep.subr.bf16.mxu0 0
    %632 = vmatpush1.bf16.msra.mxu0 0
    %633 = vmatprep.subr.bf16.mxu0 0
    %634 = vmatpush1.bf16.msra.mxu0 0
    %635 = vmatprep.subr.bf16.mxu0 0
    %636 = vmatpush1.bf16.msra.mxu0 0
    %637 = vmatprep.subr.bf16.mxu0 0
    %638 = vmatpush1.bf16.msra.mxu0 0
    %639 = vmatprep.subr.bf16.mxu0 0
    %640 = vmatpush1.bf16.msra.mxu0 0
    %641 = vmatprep.mubr.bf16.mxu0 0
    %642 = vmatmul.mubr.bf16.gmra.mrb[0].mxu0 0
    %v643 = vpop.f32.mrb[0].mxu0
    %v644 = vadd.f32 0.0, %v643
    %v645 = vpop.f32.mrb[0].mxu0
    %v646 = vadd.f32 0.0, %v645
    %v647 = vpop.f32.mrb[0].mxu0
    %v648 = vpop.f32.mrb[0].mxu0
    %649 = vdwg.mxu0
    %650 = vmatprep.subr.bf16.mxu0 0
    %651 = vmatpush1.bf16.msra.mxu0 %v563
    %652 = vmatprep.subr.bf16.mxu0 0
    %653 = vmatpush1.bf16.msra.mxu0 %v566
    %654 = vmatprep.subr.bf16.mxu0 0
    %655 = vmatpush1.bf16.msra.mxu0 %v569
    %656 = vmatprep.subr.bf16.mxu0 0
    %657 = vmatpush1.bf16.msra.mxu0 %v572
    %658 = vmatprep.subr.bf16.mxu0 0
    %659 = vmatpush1.bf16.msra.mxu0 %v575
    %660 = vmatprep.subr.bf16.mxu0 0
    %661 = vmatpush1.bf16.msra.mxu0 %v578
    %662 = vmatprep.subr.bf16.mxu0 0
    %663 = vmatpush1.bf16.msra.mxu0 %v581
    %664 = vmatprep.subr.bf16.mxu0 0
    %665 = vmatpush1.bf16.msra.mxu0 %v584
    %666 = vmatprep.subr.bf16.mxu0 0
    %667 = vmatpush1.bf16.msra.mxu0 0
    %668 = vmatprep.subr.bf16.mxu0 0
    %669 = vmatpush1.bf16.msra.mxu0 0
    %670 = vmatprep.subr.bf16.mxu0 0
    %671 = vmatpush1.bf16.msra.mxu0 0
    %672 = vmatprep.subr.bf16.mxu0 0
    %673 = vmatpush1.bf16.msra.mxu0 0
    %674 = vmatprep.subr.bf16.mxu0 0
    %675 = vmatpush1.bf16.msra.mxu0 0
    %676 = vmatprep.subr.bf16.mxu0 0
    %677 = vmatpush1.bf16.msra.mxu0 0
    %678 = vmatprep.subr.bf16.mxu0 0
    %679 = vmatpush1.bf16.msra.mxu0 0
    %680 = vmatprep.subr.bf16.mxu0 0
    %681 = vmatpush1.bf16.msra.mxu0 0
    %682 = vmatprep.mubr.bf16.mxu0 0
    %683 = vmatmul.mubr.bf16.gmra.mrb[0].mxu0 0
    %v684 = vpop.f32.mrb[0].mxu0
    %v685 = vadd.f32 0.0, %v684
    %v686 = vpop.f32.mrb[0].mxu0
    %v687 = vpop.f32.mrb[0].mxu0
    %v688 = vpop.f32.mrb[0].mxu0
    %689 = vdwg.mxu0
    %v690 = vadd.f32 %v446, %v644
    %v691 = vxor.u32 %v690, 2147483648
    %v692 = vmul.f32 %v691, 1.442695
    %v693 = vpow.pop %v692
    %v694 = vadd.f32 %v693, 1.0
    %v695 = vrcp.pop %v694
    %v696 = vmul.f32 1.0, %v695
    %v697 = vadd.f32 %v447, %v646
    %v698 = vxor.u32 %v697, 2147483648
    %v699 = vmul.f32 %v698, 1.442695
    %v700 = vpow.pop %v699
    %v701 = vadd.f32 %v700, 1.0
    %v702 = vrcp.pop %v701
    %v703 = vmul.f32 1.0, %v702
    %v705 = vlaneseq
    %v706 = vshrl.u32 %v705, 7
    %v707 = vsub.s32 0, %v706
    %v708 = vrot.slane %v445, %v707
    %v710 = vadd.f32 %v685, %v708
    %v711 = vmul.f32 %v696, %v710
    %v712 = vadd.f32 %v448, %v711
    %v713 = vtanh.pop %v712
    %v714 = vsub.f32 0.0, %v713
    %v715 = vmul.f32 %v703, %v714
    %v716 = vadd.f32 %v713, %v715
    %v717 = vld [vmem:[#allocation2 + $0x18] sm:$0xff]
    %v718 = vld [vmem:[#allocation2 + $0x20] sm:$0xff]
    %v719 = vld [vmem:[#allocation2 + $0x28] sm:$0xff]
    %v720 = vpack.c.bf16 %v716, %v716
    %721 = vmatprep.subr.bf16.mxu0 %v562
    %722 = vmatpush1.bf16.msra.mxu0 %v561
    %723 = vmatprep.subr.bf16.mxu0 %v565
    %724 = vmatpush1.bf16.msra.mxu0 %v564
    %725 = vmatprep.subr.bf16.mxu0 %v568
    %726 = vmatpush1.bf16.msra.mxu0 %v567
    %727 = vmatprep.subr.bf16.mxu0 %v571
    %728 = vmatpush1.bf16.msra.mxu0 %v570
    %729 = vmatprep.subr.bf16.mxu0 %v574
    %730 = vmatpush1.bf16.msra.mxu0 %v573
    %731 = vmatprep.subr.bf16.mxu0 %v577
    %732 = vmatpush1.bf16.msra.mxu0 %v576
    %733 = vmatprep.subr.bf16.mxu0 %v580
    %734 = vmatpush1.bf16.msra.mxu0 %v579
    %735 = vmatprep.subr.bf16.mxu0 %v583
    %736 = vmatpush1.bf16.msra.mxu0 %v582
    %737 = vmatprep.subr.bf16.mxu0 0
    %738 = vmatpush1.bf16.msra.mxu0 0
    %739 = vmatprep.subr.bf16.mxu0 0
    %740 = vmatpush1.bf16.msra.mxu0 0
    %741 = vmatprep.subr.bf16.mxu0 0
    %742 = vmatpush1.bf16.msra.mxu0 0
    %743 = vmatprep.subr.bf16.mxu0 0
    %744 = vmatpush1.bf16.msra.mxu0 0
    %745 = vmatprep.subr.bf16.mxu0 0
    %746 = vmatpush1.bf16.msra.mxu0 0
    %747 = vmatprep.subr.bf16.mxu0 0
    %748 = vmatpush1.bf16.msra.mxu0 0
    %749 = vmatprep.subr.bf16.mxu0 0
    %750 = vmatpush1.bf16.msra.mxu0 0
    %751 = vmatprep.subr.bf16.mxu0 0
    %752 = vmatpush1.bf16.msra.mxu0 0
    %753 = vmatprep.mubr.bf16.mxu0 0
    %754 = vmatmul.mubr.bf16.gmra.mrb[0].mxu0 %v720
    %v755 = vpop.f32.mrb[0].mxu0
    %v756 = vadd.f32 0.0, %v755
    %v757 = vpop.f32.mrb[0].mxu0
    %v758 = vadd.f32 0.0, %v757
    %v759 = vpop.f32.mrb[0].mxu0
    %v760 = vpop.f32.mrb[0].mxu0
    %761 = vdwg.mxu0
    %762 = vmatprep.subr.bf16.mxu0 0
    %763 = vmatpush1.bf16.msra.mxu0 %v563
    %764 = vmatprep.subr.bf16.mxu0 0
    %765 = vmatpush1.bf16.msra.mxu0 %v566
    %766 = vmatprep.subr.bf16.mxu0 0
    %767 = vmatpush1.bf16.msra.mxu0 %v569
    %768 = vmatprep.subr.bf16.mxu0 0
    %769 = vmatpush1.bf16.msra.mxu0 %v572
    %770 = vmatprep.subr.bf16.mxu0 0
    %771 = vmatpush1.bf16.msra.mxu0 %v575
    %772 = vmatprep.subr.bf16.mxu0 0
    %773 = vmatpush1.bf16.msra.mxu0 %v578
    %774 = vmatprep.subr.bf16.mxu0 0
    %775 = vmatpush1.bf16.msra.mxu0 %v581
    %776 = vmatprep.subr.bf16.mxu0 0
    %777 = vmatpush1.bf16.msra.mxu0 %v584
    %778 = vmatprep.subr.bf16.mxu0 0
    %779 = vmatpush1.bf16.msra.mxu0 0
    %780 = vmatprep.subr.bf16.mxu0 0
    %781 = vmatpush1.bf16.msra.mxu0 0
    %782 = vmatprep.subr.bf16.mxu0 0
    %783 = vmatpush1.bf16.msra.mxu0 0
    %784 = vmatprep.subr.bf16.mxu0 0
    %785 = vmatpush1.bf16.msra.mxu0 0
    %786 = vmatprep.subr.bf16.mxu0 0
    %787 = vmatpush1.bf16.msra.mxu0 0
    %788 = vmatprep.subr.bf16.mxu0 0
    %789 = vmatpush1.bf16.msra.mxu0 0
    %790 = vmatprep.subr.bf16.mxu0 0
    %791 = vmatpush1.bf16.msra.mxu0 0
    %792 = vmatprep.subr.bf16.mxu0 0
    %793 = vmatpush1.bf16.msra.mxu0 0
    %794 = vmatprep.mubr.bf16.mxu0 0
    %795 = vmatmul.mubr.bf16.gmra.mrb[0].mxu0 %v720
    %v796 = vpop.f32.mrb[0].mxu0
    %v797 = vadd.f32 0.0, %v796
    %v798 = vpop.f32.mrb[0].mxu0
    %v799 = vpop.f32.mrb[0].mxu0
    %v800 = vpop.f32.mrb[0].mxu0
    %801 = vdwg.mxu0
    %v802 = vadd.f32 %v717, %v756
    %v803 = vxor.u32 %v802, 2147483648
    %v804 = vmul.f32 %v803, 1.442695
    %v805 = vpow.pop %v804
    %v806 = vadd.f32 %v805, 1.0
    %v807 = vrcp.pop %v806
    %v808 = vmul.f32 1.0, %v807
    %v809 = vadd.f32 %v718, %v758
    %v810 = vxor.u32 %v809, 2147483648
    %v811 = vmul.f32 %v810, 1.442695
    %v812 = vpow.pop %v811
    %v813 = vadd.f32 %v812, 1.0
    %v814 = vrcp.pop %v813
    %v815 = vmul.f32 1.0, %v814
    %v816 = vadd.f32 %v797, %v708
    %v817 = vmul.f32 %v808, %v816
    %v818 = vadd.f32 %v719, %v817
    %v819 = vtanh.pop %v818
    %v820 = vsub.f32 %v716, %v819
    %v821 = vmul.f32 %v815, %v820
    %v822 = vadd.f32 %v819, %v821
    %v823 = vld [vmem:[#allocation2 + $0x30] sm:$0xff]
    %v824 = vld [vmem:[#allocation2 + $0x38] sm:$0xff]
    %v825 = vld [vmem:[#allocation2 + $0x40] sm:$0xff]
    %v826 = vpack.c.bf16 %v822, %v822
    %827 = vmatprep.subr.bf16.mxu0 %v562
    %828 = vmatpush1.bf16.msra.mxu0 %v561
    %829 = vmatprep.subr.bf16.mxu0 %v565
    %830 = vmatpush1.bf16.msra.mxu0 %v564
    %831 = vmatprep.subr.bf16.mxu0 %v568
    %832 = vmatpush1.bf16.msra.mxu0 %v567
    %833 = vmatprep.subr.bf16.mxu0 %v571
    %834 = vmatpush1.bf16.msra.mxu0 %v570
    %835 = vmatprep.subr.bf16.mxu0 %v574
    %836 = vmatpush1.bf16.msra.mxu0 %v573
    %837 = vmatprep.subr.bf16.mxu0 %v577
    %838 = vmatpush1.bf16.msra.mxu0 %v576
    %839 = vmatprep.subr.bf16.mxu0 %v580
    %840 = vmatpush1.bf16.msra.mxu0 %v579
    %841 = vmatprep.subr.bf16.mxu0 %v583
    %842 = vmatpush1.bf16.msra.mxu0 %v582
    %843 = vmatprep.subr.bf16.mxu0 0
    %844 = vmatpush1.bf16.msra.mxu0 0
    %845 = vmatprep.subr.bf16.mxu0 0
    %846 = vmatpush1.bf16.msra.mxu0 0
    %847 = vmatprep.subr.bf16.mxu0 0
    %848 = vmatpush1.bf16.msra.mxu0 0
    %849 = vmatprep.subr.bf16.mxu0 0
    %850 = vmatpush1.bf16.msra.mxu0 0
    %851 = vmatprep.subr.bf16.mxu0 0
    %852 = vmatpush1.bf16.msra.mxu0 0
    %853 = vmatprep.subr.bf16.mxu0 0
    %854 = vmatpush1.bf16.msra.mxu0 0
    %855 = vmatprep.subr.bf16.mxu0 0
    %856 = vmatpush1.bf16.msra.mxu0 0
    %857 = vmatprep.subr.bf16.mxu0 0
    %858 = vmatpush1.bf16.msra.mxu0 0
    %859 = vmatprep.mubr.bf16.mxu0 0
    %860 = vmatmul.mubr.bf16.gmra.mrb[0].mxu0 %v826
    %v861 = vpop.f32.mrb[0].mxu0
    %v862 = vadd.f32 0.0, %v861
    %v863 = vpop.f32.mrb[0].mxu0
    %v864 = vadd.f32 0.0, %v863
    %v865 = vpop.f32.mrb[0].mxu0
    %v866 = vpop.f32.mrb[0].mxu0
    %867 = vdwg.mxu0
    %868 = vmatprep.subr.bf16.mxu0 0
    %869 = vmatpush1.bf16.msra.mxu0 %v563
    %870 = vmatprep.subr.bf16.mxu0 0
    %871 = vmatpush1.bf16.msra.mxu0 %v566
    %872 = vmatprep.subr.bf16.mxu0 0
    %873 = vmatpush1.bf16.msra.mxu0 %v569
    %874 = vmatprep.subr.bf16.mxu0 0
    %875 = vmatpush1.bf16.msra.mxu0 %v572
    %876 = vmatprep.subr.bf16.mxu0 0
    %877 = vmatpush1.bf16.msra.mxu0 %v575
    %878 = vmatprep.subr.bf16.mxu0 0
    %879 = vmatpush1.bf16.msra.mxu0 %v578
    %880 = vmatprep.subr.bf16.mxu0 0
    %881 = vmatpush1.bf16.msra.mxu0 %v581
    %882 = vmatprep.subr.bf16.mxu0 0
    %883 = vmatpush1.bf16.msra.mxu0 %v584
    %884 = vmatprep.subr.bf16.mxu0 0
    %885 = vmatpush1.bf16.msra.mxu0 0
    %886 = vmatprep.subr.bf16.mxu0 0
    %887 = vmatpush1.bf16.msra.mxu0 0
    %888 = vmatprep.subr.bf16.mxu0 0
    %889 = vmatpush1.bf16.msra.mxu0 0
    %890 = vmatprep.subr.bf16.mxu0 0
    %891 = vmatpush1.bf16.msra.mxu0 0
    %892 = vmatprep.subr.bf16.mxu0 0
    %893 = vmatpush1.bf16.msra.mxu0 0
    %894 = vmatprep.subr.bf16.mxu0 0
    %895 = vmatpush1.bf16.msra.mxu0 0
    %896 = vmatprep.subr.bf16.mxu0 0
    %897 = vmatpush1.bf16.msra.mxu0 0
    %898 = vmatprep.subr.bf16.mxu0 0
    %899 = vmatpush1.bf16.msra.mxu0 0
    %900 = vmatprep.mubr.bf16.mxu0 0
    %901 = vmatmul.mubr.bf16.gmra.mrb[0].mxu0 %v826
    %v902 = vpop.f32.mrb[0].mxu0
    %v903 = vadd.f32 0.0, %v902
    %v904 = vpop.f32.mrb[0].mxu0
    %v905 = vpop.f32.mrb[0].mxu0
    %v906 = vpop.f32.mrb[0].mxu0
    %907 = vdwg.mxu0
    %v908 = vadd.f32 %v823, %v862
    %v909 = vxor.u32 %v908, 2147483648
    %v910 = vmul.f32 %v909, 1.442695
    %v911 = vpow.pop %v910
    %v912 = vadd.f32 %v911, 1.0
    %v913 = vrcp.pop %v912
    %v914 = vmul.f32 1.0, %v913
    %v915 = vadd.f32 %v824, %v864
    %v916 = vxor.u32 %v915, 2147483648
    %v917 = vmul.f32 %v916, 1.442695
    %v918 = vpow.pop %v917
    %v919 = vadd.f32 %v918, 1.0
    %v920 = vrcp.pop %v919
    %v921 = vmul.f32 1.0, %v920
    %v922 = vadd.f32 %v903, %v708
    %v923 = vmul.f32 %v914, %v922
    %v924 = vadd.f32 %v825, %v923
    %v925 = vtanh.pop %v924
    %v926 = vsub.f32 %v822, %v925
    %v927 = vmul.f32 %v921, %v926
    %v928 = vadd.f32 %v925, %v927
    %v929 = vld [vmem:[#allocation2 + $0x48] sm:$0xff]
    %v930 = vld [vmem:[#allocation2 + $0x50] sm:$0xff]
    %v931 = vld [vmem:[#allocation2 + $0x58] sm:$0xff]
    %v932 = vpack.c.bf16 %v928, %v928
    %933 = vmatprep.subr.bf16.mxu0 %v562
    %934 = vmatpush1.bf16.msra.mxu0 %v561
    %935 = vmatprep.subr.bf16.mxu0 %v565
    %936 = vmatpush1.bf16.msra.mxu0 %v564
    %937 = vmatprep.subr.bf16.mxu0 %v568
    %938 = vmatpush1.bf16.msra.mxu0 %v567
    %939 = vmatprep.subr.bf16.mxu0 %v571
    %940 = vmatpush1.bf16.msra.mxu0 %v570
    %941 = vmatprep.subr.bf16.mxu0 %v574
    %942 = vmatpush1.bf16.msra.mxu0 %v573
    %943 = vmatprep.subr.bf16.mxu0 %v577
    %944 = vmatpush1.bf16.msra.mxu0 %v576
    %945 = vmatprep.subr.bf16.mxu0 %v580
    %946 = vmatpush1.bf16.msra.mxu0 %v579
    %947 = vmatprep.subr.bf16.mxu0 %v583
    %948 = vmatpush1.bf16.msra.mxu0 %v582
    %949 = vmatprep.subr.bf16.mxu0 0
    %950 = vmatpush1.bf16.msra.mxu0 0
    %951 = vmatprep.subr.bf16.mxu0 0
    %952 = vmatpush1.bf16.msra.mxu0 0
    %953 = vmatprep.subr.bf16.mxu0 0
    %954 = vmatpush1.bf16.msra.mxu0 0
    %955 = vmatprep.subr.bf16.mxu0 0
    %956 = vmatpush1.bf16.msra.mxu0 0
    %957 = vmatprep.subr.bf16.mxu0 0
    %958 = vmatpush1.bf16.msra.mxu0 0
    %959 = vmatprep.subr.bf16.mxu0 0
    %960 = vmatpush1.bf16.msra.mxu0 0
    %961 = vmatprep.subr.bf16.mxu0 0
    %962 = vmatpush1.bf16.msra.mxu0 0
    %963 = vmatprep.subr.bf16.mxu0 0
    %964 = vmatpush1.bf16.msra.mxu0 0
    %965 = vmatprep.mubr.bf16.mxu0 0
    %966 = vmatmul.mubr.bf16.gmra.mrb[0].mxu0 %v932
    %v967 = vpop.f32.mrb[0].mxu0
    %v968 = vadd.f32 0.0, %v967
    %v969 = vpop.f32.mrb[0].mxu0
    %v970 = vadd.f32 0.0, %v969
    %v971 = vpop.f32.mrb[0].mxu0
    %v972 = vpop.f32.mrb[0].mxu0
    %973 = vdwg.mxu0
    %974 = vmatprep.subr.bf16.mxu0 0
    %975 = vmatpush1.bf16.msra.mxu0 %v563
    %976 = vmatprep.subr.bf16.mxu0 0
    %977 = vmatpush1.bf16.msra.mxu0 %v566
    %978 = vmatprep.subr.bf16.mxu0 0
    %979 = vmatpush1.bf16.msra.mxu0 %v569
    %980 = vmatprep.subr.bf16.mxu0 0
    %981 = vmatpush1.bf16.msra.mxu0 %v572
    %982 = vmatprep.subr.bf16.mxu0 0
    %983 = vmatpush1.bf16.msra.mxu0 %v575
    %984 = vmatprep.subr.bf16.mxu0 0
    %985 = vmatpush1.bf16.msra.mxu0 %v578
    %986 = vmatprep.subr.bf16.mxu0 0
    %987 = vmatpush1.bf16.msra.mxu0 %v581
    %988 = vmatprep.subr.bf16.mxu0 0
    %989 = vmatpush1.bf16.msra.mxu0 %v584
    %990 = vmatprep.subr.bf16.mxu0 0
    %991 = vmatpush1.bf16.msra.mxu0 0
    %992 = vmatprep.subr.bf16.mxu0 0
    %993 = vmatpush1.bf16.msra.mxu0 0
    %994 = vmatprep.subr.bf16.mxu0 0
    %995 = vmatpush1.bf16.msra.mxu0 0
    %996 = vmatprep.subr.bf16.mxu0 0
    %997 = vmatpush1.bf16.msra.mxu0 0
    %998 = vmatprep.subr.bf16.mxu0 0
    %999 = vmatpush1.bf16.msra.mxu0 0
    %1000 = vmatprep.subr.bf16.mxu0 0
    %1001 = vmatpush1.bf16.msra.mxu0 0
    %1002 = vmatprep.subr.bf16.mxu0 0
    %1003 = vmatpush1.bf16.msra.mxu0 0
    %1004 = vmatprep.subr.bf16.mxu0 0
    %1005 = vmatpush1.bf16.msra.mxu0 0
    %1006 = vmatprep.mubr.bf16.mxu0 0
    %1007 = vmatmul.mubr.bf16.gmra.mrb[0].mxu0 %v932
    %v1008 = vpop.f32.mrb[0].mxu0
    %v1009 = vadd.f32 0.0, %v1008
    %v1010 = vpop.f32.mrb[0].mxu0
    %v1011 = vpop.f32.mrb[0].mxu0
    %v1012 = vpop.f32.mrb[0].mxu0
    %1013 = vdwg.mxu0
    %v1014 = vadd.f32 %v929, %v968
    %v1015 = vxor.u32 %v1014, 2147483648
    %v1016 = vmul.f32 %v1015, 1.442695
    %v1017 = vpow.pop %v1016
    %v1018 = vadd.f32 %v1017, 1.0
    %v1019 = vrcp.pop %v1018
    %v1020 = vmul.f32 1.0, %v1019
    %v1021 = vadd.f32 %v930, %v970
    %v1022 = vxor.u32 %v1021, 2147483648
    %v1023 = vmul.f32 %v1022, 1.442695
    %v1024 = vpow.pop %v1023
    %v1025 = vadd.f32 %v1024, 1.0
    %v1026 = vrcp.pop %v1025
    %v1027 = vmul.f32 1.0, %v1026
    %v1028 = vadd.f32 %v1009, %v708
    %v1029 = vmul.f32 %v1020, %v1028
    %v1030 = vadd.f32 %v931, %v1029
    %v1031 = vtanh.pop %v1030
    %v1032 = vsub.f32 %v928, %v1031
    %v1033 = vmul.f32 %v1027, %v1032
    %v1034 = vadd.f32 %v1031, %v1033
    %v1035 = vld [vmem:[#allocation2 + $0x60] sm:$0xff]
    %v1036 = vld [vmem:[#allocation2 + $0x68] sm:$0xff]
    %v1037 = vld [vmem:[#allocation2 + $0x70] sm:$0xff]
    %v1038 = vpack.c.bf16 %v1034, %v1034
    %1039 = vmatprep.subr.bf16.mxu0 %v562
    %1040 = vmatpush1.bf16.msra.mxu0 %v561
    %1041 = vmatprep.subr.bf16.mxu0 %v565
    %1042 = vmatpush1.bf16.msra.mxu0 %v564
    %1043 = vmatprep.subr.bf16.mxu0 %v568
    %1044 = vmatpush1.bf16.msra.mxu0 %v567
    %1045 = vmatprep.subr.bf16.mxu0 %v571
    %1046 = vmatpush1.bf16.msra.mxu0 %v570
    %1047 = vmatprep.subr.bf16.mxu0 %v574
    %1048 = vmatpush1.bf16.msra.mxu0 %v573
    %1049 = vmatprep.subr.bf16.mxu0 %v577
    %1050 = vmatpush1.bf16.msra.mxu0 %v576
    %1051 = vmatprep.subr.bf16.mxu0 %v580
    %1052 = vmatpush1.bf16.msra.mxu0 %v579
    %1053 = vmatprep.subr.bf16.mxu0 %v583
    %1054 = vmatpush1.bf16.msra.mxu0 %v582
    %1055 = vmatprep.subr.bf16.mxu0 0
    %1056 = vmatpush1.bf16.msra.mxu0 0
    %1057 = vmatprep.subr.bf16.mxu0 0
    %1058 = vmatpush1.bf16.msra.mxu0 0
    %1059 = vmatprep.subr.bf16.mxu0 0
    %1060 = vmatpush1.bf16.msra.mxu0 0
    %1061 = vmatprep.subr.bf16.mxu0 0
    %1062 = vmatpush1.bf16.msra.mxu0 0
    %1063 = vmatprep.subr.bf16.mxu0 0
    %1064 = vmatpush1.bf16.msra.mxu0 0
    %1065 = vmatprep.subr.bf16.mxu0 0
    %1066 = vmatpush1.bf16.msra.mxu0 0
    %1067 = vmatprep.subr.bf16.mxu0 0
    %1068 = vmatpush1.bf16.msra.mxu0 0
    %1069 = vmatprep.subr.bf16.mxu0 0
    %1070 = vmatpush1.bf16.msra.mxu0 0
    %1071 = vmatprep.mubr.bf16.mxu0 0
    %1072 = vmatmul.mubr.bf16.gmra.mrb[0].mxu0 %v1038
    %v1073 = vpop.f32.mrb[0].mxu0
    %v1074 = vadd.f32 0.0, %v1073
    %v1075 = vpop.f32.mrb[0].mxu0
    %v1076 = vadd.f32 0.0, %v1075
    %v1077 = vpop.f32.mrb[0].mxu0
    %v1078 = vpop.f32.mrb[0].mxu0
    %1079 = vdwg.mxu0
    %1080 = vmatprep.subr.bf16.mxu0 0
    %1081 = vmatpush1.bf16.msra.mxu0 %v563
    %1082 = vmatprep.subr.bf16.mxu0 0
    %1083 = vmatpush1.bf16.msra.mxu0 %v566
    %1084 = vmatprep.subr.bf16.mxu0 0
    %1085 = vmatpush1.bf16.msra.mxu0 %v569
    %1086 = vmatprep.subr.bf16.mxu0 0
    %1087 = vmatpush1.bf16.msra.mxu0 %v572
    %1088 = vmatprep.subr.bf16.mxu0 0
    %1089 = vmatpush1.bf16.msra.mxu0 %v575
    %1090 = vmatprep.subr.bf16.mxu0 0
    %1091 = vmatpush1.bf16.msra.mxu0 %v578
    %1092 = vmatprep.subr.bf16.mxu0 0
    %1093 = vmatpush1.bf16.msra.mxu0 %v581
    %1094 = vmatprep.subr.bf16.mxu0 0
    %1095 = vmatpush1.bf16.msra.mxu0 %v584
    %1096 = vmatprep.subr.bf16.mxu0 0
    %1097 = vmatpush1.bf16.msra.mxu0 0
    %1098 = vmatprep.subr.bf16.mxu0 0
    %1099 = vmatpush1.bf16.msra.mxu0 0
    %1100 = vmatprep.subr.bf16.mxu0 0
    %1101 = vmatpush1.bf16.msra.mxu0 0
    %1102 = vmatprep.subr.bf16.mxu0 0
    %1103 = vmatpush1.bf16.msra.mxu0 0
    %1104 = vmatprep.subr.bf16.mxu0 0
    %1105 = vmatpush1.bf16.msra.mxu0 0
    %1106 = vmatprep.subr.bf16.mxu0 0
    %1107 = vmatpush1.bf16.msra.mxu0 0
    %1108 = vmatprep.subr.bf16.mxu0 0
    %1109 = vmatpush1.bf16.msra.mxu0 0
    %1110 = vmatprep.subr.bf16.mxu0 0
    %1111 = vmatpush1.bf16.msra.mxu0 0
    %1112 = vmatprep.mubr.bf16.mxu0 0
    %1113 = vmatmul.mubr.bf16.gmra.mrb[0].mxu0 %v1038
    %v1114 = vpop.f32.mrb[0].mxu0
    %v1115 = vadd.f32 0.0, %v1114
    %v1116 = vpop.f32.mrb[0].mxu0
    %v1117 = vpop.f32.mrb[0].mxu0
    %v1118 = vpop.f32.mrb[0].mxu0
    %1119 = vdwg.mxu0
    %v1120 = vadd.f32 %v1035, %v1074
    %v1121 = vxor.u32 %v1120, 2147483648
    %v1122 = vmul.f32 %v1121, 1.442695
    %v1123 = vpow.pop %v1122
    %v1124 = vadd.f32 %v1123, 1.0
    %v1125 = vrcp.pop %v1124
    %v1126 = vmul.f32 1.0, %v1125
    %v1127 = vadd.f32 %v1036, %v1076
    %v1128 = vxor.u32 %v1127, 2147483648
    %v1129 = vmul.f32 %v1128, 1.442695
    %v1130 = vpow.pop %v1129
    %v1131 = vadd.f32 %v1130, 1.0
    %v1132 = vrcp.pop %v1131
    %v1133 = vmul.f32 1.0, %v1132
    %v1134 = vadd.f32 %v1115, %v708
    %v1135 = vmul.f32 %v1126, %v1134
    %v1136 = vadd.f32 %v1037, %v1135
    %v1137 = vtanh.pop %v1136
    %v1138 = vsub.f32 %v1034, %v1137
    %v1139 = vmul.f32 %v1133, %v1138
    %v1140 = vadd.f32 %v1137, %v1139
    %v1141 = vld [vmem:[#allocation2 + $0x78] sm:$0xff]
    %v1142 = vld [vmem:[#allocation2 + $0x80] sm:$0xff]
    %v1143 = vld [vmem:[#allocation2 + $0x88] sm:$0xff]
    %v1144 = vpack.c.bf16 %v1140, %v1140
    %1145 = vmatprep.subr.bf16.mxu0 %v562
    %1146 = vmatpush1.bf16.msra.mxu0 %v561
    %1147 = vmatprep.subr.bf16.mxu0 %v565
    %1148 = vmatpush1.bf16.msra.mxu0 %v564
    %1149 = vmatprep.subr.bf16.mxu0 %v568
    %1150 = vmatpush1.bf16.msra.mxu0 %v567
    %1151 = vmatprep.subr.bf16.mxu0 %v571
    %1152 = vmatpush1.bf16.msra.mxu0 %v570
    %1153 = vmatprep.subr.bf16.mxu0 %v574
    %1154 = vmatpush1.bf16.msra.mxu0 %v573
    %1155 = vmatprep.subr.bf16.mxu0 %v577
    %1156 = vmatpush1.bf16.msra.mxu0 %v576
    %1157 = vmatprep.subr.bf16.mxu0 %v580
    %1158 = vmatpush1.bf16.msra.mxu0 %v579
    %1159 = vmatprep.subr.bf16.mxu0 %v583
    %1160 = vmatpush1.bf16.msra.mxu0 %v582
    %1161 = vmatprep.subr.bf16.mxu0 0
    %1162 = vmatpush1.bf16.msra.mxu0 0
    %1163 = vmatprep.subr.bf16.mxu0 0
    %1164 = vmatpush1.bf16.msra.mxu0 0
    %1165 = vmatprep.subr.bf16.mxu0 0
    %1166 = vmatpush1.bf16.msra.mxu0 0
    %1167 = vmatprep.subr.bf16.mxu0 0
    %1168 = vmatpush1.bf16.msra.mxu0 0
    %1169 = vmatprep.subr.bf16.mxu0 0
    %1170 = vmatpush1.bf16.msra.mxu0 0
    %1171 = vmatprep.subr.bf16.mxu0 0
    %1172 = vmatpush1.bf16.msra.mxu0 0
    %1173 = vmatprep.subr.bf16.mxu0 0
    %1174 = vmatpush1.bf16.msra.mxu0 0
    %1175 = vmatprep.subr.bf16.mxu0 0
    %1176 = vmatpush1.bf16.msra.mxu0 0
    %1177 = vmatprep.mubr.bf16.mxu0 0
    %1178 = vmatmul.mubr.bf16.gmra.mrb[0].mxu0 %v1144
    %v1179 = vpop.f32.mrb[0].mxu0
    %v1180 = vadd.f32 0.0, %v1179
    %v1181 = vpop.f32.mrb[0].mxu0
    %v1182 = vadd.f32 0.0, %v1181
    %v1183 = vpop.f32.mrb[0].mxu0
    %v1184 = vpop.f32.mrb[0].mxu0
    %1185 = vdwg.mxu0
    %1186 = vmatprep.subr.bf16.mxu0 0
    %1187 = vmatpush1.bf16.msra.mxu0 %v563
    %1188 = vmatprep.subr.bf16.mxu0 0
    %1189 = vmatpush1.bf16.msra.mxu0 %v566
    %1190 = vmatprep.subr.bf16.mxu0 0
    %1191 = vmatpush1.bf16.msra.mxu0 %v569
    %1192 = vmatprep.subr.bf16.mxu0 0
    %1193 = vmatpush1.bf16.msra.mxu0 %v572
    %1194 = vmatprep.subr.bf16.mxu0 0
    %1195 = vmatpush1.bf16.msra.mxu0 %v575
    %1196 = vmatprep.subr.bf16.mxu0 0
    %1197 = vmatpush1.bf16.msra.mxu0 %v578
    %1198 = vmatprep.subr.bf16.mxu0 0
    %1199 = vmatpush1.bf16.msra.mxu0 %v581
    %1200 = vmatprep.subr.bf16.mxu0 0
    %1201 = vmatpush1.bf16.msra.mxu0 %v584
    %1202 = vmatprep.subr.bf16.mxu0 0
    %1203 = vmatpush1.bf16.msra.mxu0 0
    %1204 = vmatprep.subr.bf16.mxu0 0
    %1205 = vmatpush1.bf16.msra.mxu0 0
    %1206 = vmatprep.subr.bf16.mxu0 0
    %1207 = vmatpush1.bf16.msra.mxu0 0
    %1208 = vmatprep.subr.bf16.mxu0 0
    %1209 = vmatpush1.bf16.msra.mxu0 0
    %1210 = vmatprep.subr.bf16.mxu0 0
    %1211 = vmatpush1.bf16.msra.mxu0 0
    %1212 = vmatprep.subr.bf16.mxu0 0
    %1213 = vmatpush1.bf16.msra.mxu0 0
    %1214 = vmatprep.subr.bf16.mxu0 0
    %1215 = vmatpush1.bf16.msra.mxu0 0
    %1216 = vmatprep.subr.bf16.mxu0 0
    %1217 = vmatpush1.bf16.msra.mxu0 0
    %1218 = vmatprep.mubr.bf16.mxu0 0
    %1219 = vmatmul.mubr.bf16.gmra.mrb[0].mxu0 %v1144
    %v1220 = vpop.f32.mrb[0].mxu0
    %v1221 = vadd.f32 0.0, %v1220
    %v1222 = vpop.f32.mrb[0].mxu0
    %v1223 = vpop.f32.mrb[0].mxu0
    %v1224 = vpop.f32.mrb[0].mxu0
    %1225 = vdwg.mxu0
    %v1226 = vadd.f32 %v1141, %v1180
    %v1227 = vxor.u32 %v1226, 2147483648
    %v1228 = vmul.f32 %v1227, 1.442695
    %v1229 = vpow.pop %v1228
    %v1230 = vadd.f32 %v1229, 1.0
    %v1231 = vrcp.pop %v1230
    %v1232 = vmul.f32 1.0, %v1231
    %v1233 = vadd.f32 %v1142, %v1182
    %v1234 = vxor.u32 %v1233, 2147483648
    %v1235 = vmul.f32 %v1234, 1.442695
    %v1236 = vpow.pop %v1235
    %v1237 = vadd.f32 %v1236, 1.0
    %v1238 = vrcp.pop %v1237
    %v1239 = vmul.f32 1.0, %v1238
    %v1240 = vadd.f32 %v1221, %v708
    %v1241 = vmul.f32 %v1232, %v1240
    %v1242 = vadd.f32 %v1143, %v1241
    %v1243 = vtanh.pop %v1242
    %v1244 = vsub.f32 %v1140, %v1243
    %v1245 = vmul.f32 %v1239, %v1244
    %v1246 = vadd.f32 %v1243, %v1245
    %v1247 = vld [vmem:[#allocation2 + $0x90] sm:$0xff]
    %v1248 = vld [vmem:[#allocation2 + $0x98] sm:$0xff]
    %v1249 = vld [vmem:[#allocation2 + $0xa0] sm:$0xff]
    %v1250 = vpack.c.bf16 %v1246, %v1246
    %1251 = vmatprep.subr.bf16.mxu0 %v562
    %1252 = vmatpush1.bf16.msra.mxu0 %v561
    %1253 = vmatprep.subr.bf16.mxu0 %v565
    %1254 = vmatpush1.bf16.msra.mxu0 %v564
    %1255 = vmatprep.subr.bf16.mxu0 %v568
    %1256 = vmatpush1.bf16.msra.mxu0 %v567
    %1257 = vmatprep.subr.bf16.mxu0 %v571
    %1258 = vmatpush1.bf16.msra.mxu0 %v570
    %1259 = vmatprep.subr.bf16.mxu0 %v574
    %1260 = vmatpush1.bf16.msra.mxu0 %v573
    %1261 = vmatprep.subr.bf16.mxu0 %v577
    %1262 = vmatpush1.bf16.msra.mxu0 %v576
    %1263 = vmatprep.subr.bf16.mxu0 %v580
    %1264 = vmatpush1.bf16.msra.mxu0 %v579
    %1265 = vmatprep.subr.bf16.mxu0 %v583
    %1266 = vmatpush1.bf16.msra.mxu0 %v582
    %1267 = vmatprep.subr.bf16.mxu0 0
    %1268 = vmatpush1.bf16.msra.mxu0 0
    %1269 = vmatprep.subr.bf16.mxu0 0
    %1270 = vmatpush1.bf16.msra.mxu0 0
    %1271 = vmatprep.subr.bf16.mxu0 0
    %1272 = vmatpush1.bf16.msra.mxu0 0
    %1273 = vmatprep.subr.bf16.mxu0 0
    %1274 = vmatpush1.bf16.msra.mxu0 0
    %1275 = vmatprep.subr.bf16.mxu0 0
    %1276 = vmatpush1.bf16.msra.mxu0 0
    %1277 = vmatprep.subr.bf16.mxu0 0
    %1278 = vmatpush1.bf16.msra.mxu0 0
    %1279 = vmatprep.subr.bf16.mxu0 0
    %1280 = vmatpush1.bf16.msra.mxu0 0
    %1281 = vmatprep.subr.bf16.mxu0 0
    %1282 = vmatpush1.bf16.msra.mxu0 0
    %1283 = vmatprep.mubr.bf16.mxu0 0
    %1284 = vmatmul.mubr.bf16.gmra.mrb[0].mxu0 %v1250
    %v1285 = vpop.f32.mrb[0].mxu0
    %v1286 = vadd.f32 0.0, %v1285
    %v1287 = vpop.f32.mrb[0].mxu0
    %v1288 = vadd.f32 0.0, %v1287
    %v1289 = vpop.f32.mrb[0].mxu0
    %v1290 = vpop.f32.mrb[0].mxu0
    %1291 = vdwg.mxu0
    %1292 = vmatprep.subr.bf16.mxu0 0
    %1293 = vmatpush1.bf16.msra.mxu0 %v563
    %1294 = vmatprep.subr.bf16.mxu0 0
    %1295 = vmatpush1.bf16.msra.mxu0 %v566
    %1296 = vmatprep.subr.bf16.mxu0 0
    %1297 = vmatpush1.bf16.msra.mxu0 %v569
    %1298 = vmatprep.subr.bf16.mxu0 0
    %1299 = vmatpush1.bf16.msra.mxu0 %v572
    %1300 = vmatprep.subr.bf16.mxu0 0
    %1301 = vmatpush1.bf16.msra.mxu0 %v575
    %1302 = vmatprep.subr.bf16.mxu0 0
    %1303 = vmatpush1.bf16.msra.mxu0 %v578
    %1304 = vmatprep.subr.bf16.mxu0 0
    %1305 = vmatpush1.bf16.msra.mxu0 %v581
    %1306 = vmatprep.subr.bf16.mxu0 0
    %1307 = vmatpush1.bf16.msra.mxu0 %v584
    %1308 = vmatprep.subr.bf16.mxu0 0
    %1309 = vmatpush1.bf16.msra.mxu0 0
    %1310 = vmatprep.subr.bf16.mxu0 0
    %1311 = vmatpush1.bf16.msra.mxu0 0
    %1312 = vmatprep.subr.bf16.mxu0 0
    %1313 = vmatpush1.bf16.msra.mxu0 0
    %1314 = vmatprep.subr.bf16.mxu0 0
    %1315 = vmatpush1.bf16.msra.mxu0 0
    %1316 = vmatprep.subr.bf16.mxu0 0
    %1317 = vmatpush1.bf16.msra.mxu0 0
    %1318 = vmatprep.subr.bf16.mxu0 0
    %1319 = vmatpush1.bf16.msra.mxu0 0
    %1320 = vmatprep.subr.bf16.mxu0 0
    %1321 = vmatpush1.bf16.msra.mxu0 0
    %1322 = vmatprep.subr.bf16.mxu0 0
    %1323 = vmatpush1.bf16.msra.mxu0 0
    %1324 = vmatprep.mubr.bf16.mxu0 0
    %1325 = vmatmul.mubr.bf16.gmra.mrb[0].mxu0 %v1250
    %v1326 = vpop.f32.mrb[0].mxu0
    %v1327 = vadd.f32 0.0, %v1326
    %v1328 = vpop.f32.mrb[0].mxu0
    %v1329 = vpop.f32.mrb[0].mxu0
    %v1330 = vpop.f32.mrb[0].mxu0
    %1331 = vdwg.mxu0
    %v1332 = vadd.f32 %v1247, %v1286
    %v1333 = vxor.u32 %v1332, 2147483648
    %v1334 = vmul.f32 %v1333, 1.442695
    %v1335 = vpow.pop %v1334
    %v1336 = vadd.f32 %v1335, 1.0
    %v1337 = vrcp.pop %v1336
    %v1338 = vmul.f32 1.0, %v1337
    %v1339 = vadd.f32 %v1248, %v1288
    %v1340 = vxor.u32 %v1339, 2147483648
    %v1341 = vmul.f32 %v1340, 1.442695
    %v1342 = vpow.pop %v1341
    %v1343 = vadd.f32 %v1342, 1.0
    %v1344 = vrcp.pop %v1343
    %v1345 = vmul.f32 1.0, %v1344
    %v1346 = vadd.f32 %v1327, %v708
    %v1347 = vmul.f32 %v1338, %v1346
    %v1348 = vadd.f32 %v1249, %v1347
    %v1349 = vtanh.pop %v1348
    %v1350 = vsub.f32 %v1246, %v1349
    %v1351 = vmul.f32 %v1345, %v1350
    %v1352 = vadd.f32 %v1349, %v1351
    %v1353 = vld [vmem:[#allocation2 + $0xa8] sm:$0xff]
    %v1354 = vld [vmem:[#allocation2 + $0xb0] sm:$0xff]
    %v1355 = vld [vmem:[#allocation2 + $0xb8] sm:$0xff]
    %v1356 = vpack.c.bf16 %v1352, %v1352
    %1357 = vmatprep.subr.bf16.mxu0 %v562
    %1358 = vmatpush1.bf16.msra.mxu0 %v561
    %1359 = vmatprep.subr.bf16.mxu0 %v565
    %1360 = vmatpush1.bf16.msra.mxu0 %v564
    %1361 = vmatprep.subr.bf16.mxu0 %v568
    %1362 = vmatpush1.bf16.msra.mxu0 %v567
    %1363 = vmatprep.subr.bf16.mxu0 %v571
    %1364 = vmatpush1.bf16.msra.mxu0 %v570
    %1365 = vmatprep.subr.bf16.mxu0 %v574
    %1366 = vmatpush1.bf16.msra.mxu0 %v573
    %1367 = vmatprep.subr.bf16.mxu0 %v577
    %1368 = vmatpush1.bf16.msra.mxu0 %v576
    %1369 = vmatprep.subr.bf16.mxu0 %v580
    %1370 = vmatpush1.bf16.msra.mxu0 %v579
    %1371 = vmatprep.subr.bf16.mxu0 %v583
    %1372 = vmatpush1.bf16.msra.mxu0 %v582
    %1373 = vmatprep.subr.bf16.mxu0 0
    %1374 = vmatpush1.bf16.msra.mxu0 0
    %1375 = vmatprep.subr.bf16.mxu0 0
    %1376 = vmatpush1.bf16.msra.mxu0 0
    %1377 = vmatprep.subr.bf16.mxu0 0
    %1378 = vmatpush1.bf16.msra.mxu0 0
    %1379 = vmatprep.subr.bf16.mxu0 0
    %1380 = vmatpush1.bf16.msra.mxu0 0
    %1381 = vmatprep.subr.bf16.mxu0 0
    %1382 = vmatpush1.bf16.msra.mxu0 0
    %1383 = vmatprep.subr.bf16.mxu0 0
    %1384 = vmatpush1.bf16.msra.mxu0 0
    %1385 = vmatprep.subr.bf16.mxu0 0
    %1386 = vmatpush1.bf16.msra.mxu0 0
    %1387 = vmatprep.subr.bf16.mxu0 0
    %1388 = vmatpush1.bf16.msra.mxu0 0
    %1389 = vmatprep.mubr.bf16.mxu0 0
    %1390 = vmatmul.mubr.bf16.gmra.mrb[0].mxu0 %v1356
    %v1391 = vpop.f32.mrb[0].mxu0
    %v1392 = vadd.f32 0.0, %v1391
    %v1393 = vpop.f32.mrb[0].mxu0
    %v1394 = vadd.f32 0.0, %v1393
    %v1395 = vpop.f32.mrb[0].mxu0
    %v1396 = vpop.f32.mrb[0].mxu0
    %1397 = vdwg.mxu0
    %1398 = vmatprep.subr.bf16.mxu0 0
    %1399 = vmatpush1.bf16.msra.mxu0 %v563
    %1400 = vmatprep.subr.bf16.mxu0 0
    %1401 = vmatpush1.bf16.msra.mxu0 %v566
    %1402 = vmatprep.subr.bf16.mxu0 0
    %1403 = vmatpush1.bf16.msra.mxu0 %v569
    %1404 = vmatprep.subr.bf16.mxu0 0
    %1405 = vmatpush1.bf16.msra.mxu0 %v572
    %1406 = vmatprep.subr.bf16.mxu0 0
    %1407 = vmatpush1.bf16.msra.mxu0 %v575
    %1408 = vmatprep.subr.bf16.mxu0 0
    %1409 = vmatpush1.bf16.msra.mxu0 %v578
    %1410 = vmatprep.subr.bf16.mxu0 0
    %1411 = vmatpush1.bf16.msra.mxu0 %v581
    %1412 = vmatprep.subr.bf16.mxu0 0
    %1413 = vmatpush1.bf16.msra.mxu0 %v584
    %1414 = vmatprep.subr.bf16.mxu0 0
    %1415 = vmatpush1.bf16.msra.mxu0 0
    %1416 = vmatprep.subr.bf16.mxu0 0
    %1417 = vmatpush1.bf16.msra.mxu0 0
    %1418 = vmatprep.subr.bf16.mxu0 0
    %1419 = vmatpush1.bf16.msra.mxu0 0
    %1420 = vmatprep.subr.bf16.mxu0 0
    %1421 = vmatpush1.bf16.msra.mxu0 0
    %1422 = vmatprep.subr.bf16.mxu0 0
    %1423 = vmatpush1.bf16.msra.mxu0 0
    %1424 = vmatprep.subr.bf16.mxu0 0
    %1425 = vmatpush1.bf16.msra.mxu0 0
    %1426 = vmatprep.subr.bf16.mxu0 0
    %1427 = vmatpush1.bf16.msra.mxu0 0
    %1428 = vmatprep.subr.bf16.mxu0 0
    %1429 = vmatpush1.bf16.msra.mxu0 0
    %1430 = vmatprep.mubr.bf16.mxu0 0
    %1431 = vmatmul.mubr.bf16.gmra.mrb[0].mxu0 %v1356
    %v1432 = vpop.f32.mrb[0].mxu0
    %v1433 = vadd.f32 0.0, %v1432
    %v1434 = vpop.f32.mrb[0].mxu0
    %v1435 = vpop.f32.mrb[0].mxu0
    %v1436 = vpop.f32.mrb[0].mxu0
    %1437 = vdwg.mxu0
    %v1438 = vadd.f32 %v1353, %v1392
    %v1439 = vxor.u32 %v1438, 2147483648
    %v1440 = vmul.f32 %v1439, 1.442695
    %v1441 = vpow.pop %v1440
    %v1442 = vadd.f32 %v1441, 1.0
    %v1443 = vrcp.pop %v1442
    %v1444 = vmul.f32 1.0, %v1443
    %v1445 = vadd.f32 %v1354, %v1394
    %v1446 = vxor.u32 %v1445, 2147483648
    %v1447 = vmul.f32 %v1446, 1.442695
    %v1448 = vpow.pop %v1447
    %v1449 = vadd.f32 %v1448, 1.0
    %v1450 = vrcp.pop %v1449
    %v1451 = vmul.f32 1.0, %v1450
    %v1452 = vadd.f32 %v1433, %v708
    %v1453 = vmul.f32 %v1444, %v1452
    %v1454 = vadd.f32 %v1355, %v1453
    %v1455 = vtanh.pop %v1454
    %v1456 = vsub.f32 %v1352, %v1455
    %v1457 = vmul.f32 %v1451, %v1456
    %v1458 = vadd.f32 %v1455, %v1457
    %v1459 = vpack.c.bf16 %v1458, %v1458
    %v1460 = vld [vmem:[%s5] sm:$0xf]
    %v1461 = vld [vmem:[%s5 + $0x4] sm:$0xf]
    %v1462 = vld [vmem:[%s5 + $0x8] sm:$0xf]
    %v1463 = vld [vmem:[%s5 + $0xc] sm:$0xf]
    %v1464 = vld [vmem:[%s5 + $0x10] sm:$0xf]
    %v1465 = vld [vmem:[%s5 + $0x14] sm:$0xf]
    %v1466 = vld [vmem:[%s5 + $0x18] sm:$0xf]
    %v1467 = vld [vmem:[%s5 + $0x1c] sm:$0xf]
    %v1468 = vld [vmem:[%s5 + $0x20] sm:$0xf]
    %v1469 = vld [vmem:[%s5 + $0x24] sm:$0xf]
    %v1470 = vld [vmem:[%s5 + $0x28] sm:$0xf]
    %v1471 = vld [vmem:[%s5 + $0x2c] sm:$0xf]
    %v1472 = vld [vmem:[%s5 + $0x30] sm:$0xf]
    %v1473 = vld [vmem:[%s5 + $0x34] sm:$0xf]
    %v1474 = vld [vmem:[%s5 + $0x38] sm:$0xf]
    %v1475 = vld [vmem:[%s5 + $0x3c] sm:$0xf]
    %v1476 = vld [vmem:[%s6] sm:$0x1]
    %v1478 = vlaneseq
    %v1479 = vshrl.u32 %v1478, 7
    %v1480 = vsub.s32 0, %v1479
    %v1481 = vrot.slane %v1476, %v1480
    %v1499 = vunpack.c.l.b16 %v1460
    %v1500 = vunpack.c.l.b16 %v1461
    %v1501 = vunpack.c.l.b16 %v1462
    %v1502 = vunpack.c.l.b16 %v1463
    %v1503 = vunpack.c.l.b16 %v1464
    %v1504 = vunpack.c.l.b16 %v1465
    %v1505 = vunpack.c.l.b16 %v1466
    %v1506 = vunpack.c.l.b16 %v1467
    %v1507 = vunpack.c.l.b16 %v1468
    %v1508 = vunpack.c.l.b16 %v1469
    %v1509 = vunpack.c.l.b16 %v1470
    %v1510 = vunpack.c.l.b16 %v1471
    %v1511 = vunpack.c.l.b16 %v1472
    %v1512 = vunpack.c.l.b16 %v1473
    %v1513 = vunpack.c.l.b16 %v1474
    %v1514 = vunpack.c.l.b16 %v1475
    %v1515 = vpack.c.b16 %v1500, %v1499
    %v1516 = vpack.c.b16 %v1502, %v1501
    %v1517 = vpack.c.b16 %v1504, %v1503
    %v1518 = vpack.c.b16 %v1506, %v1505
    %v1519 = vpack.c.b16 %v1508, %v1507
    %v1520 = vpack.c.b16 %v1510, %v1509
    %v1521 = vpack.c.b16 %v1512, %v1511
    %v1522 = vpack.c.b16 %v1514, %v1513
    %1531 = vmatprep.subr.bf16.mxu0 0
    %1532 = vmatpush1.bf16.msra.mxu0 %v1515
    %1533 = vmatprep.subr.bf16.mxu0 0
    %1534 = vmatpush1.bf16.msra.mxu0 %v1516
    %1535 = vmatprep.subr.bf16.mxu0 0
    %1536 = vmatpush1.bf16.msra.mxu0 %v1517
    %1537 = vmatprep.subr.bf16.mxu0 0
    %1538 = vmatpush1.bf16.msra.mxu0 %v1518
    %1539 = vmatprep.subr.bf16.mxu0 0
    %1540 = vmatpush1.bf16.msra.mxu0 %v1519
    %1541 = vmatprep.subr.bf16.mxu0 0
    %1542 = vmatpush1.bf16.msra.mxu0 %v1520
    %1543 = vmatprep.subr.bf16.mxu0 0
    %1544 = vmatpush1.bf16.msra.mxu0 %v1521
    %1545 = vmatprep.subr.bf16.mxu0 0
    %1546 = vmatpush1.bf16.msra.mxu0 %v1522
    %1547 = vmatprep.subr.bf16.mxu0 0
    %1548 = vmatpush1.bf16.msra.mxu0 0
    %1549 = vmatprep.subr.bf16.mxu0 0
    %1550 = vmatpush1.bf16.msra.mxu0 0
    %1551 = vmatprep.subr.bf16.mxu0 0
    %1552 = vmatpush1.bf16.msra.mxu0 0
    %1553 = vmatprep.subr.bf16.mxu0 0
    %1554 = vmatpush1.bf16.msra.mxu0 0
    %1555 = vmatprep.subr.bf16.mxu0 0
    %1556 = vmatpush1.bf16.msra.mxu0 0
    %1557 = vmatprep.subr.bf16.mxu0 0
    %1558 = vmatpush1.bf16.msra.mxu0 0
    %1559 = vmatprep.subr.bf16.mxu0 0
    %1560 = vmatpush1.bf16.msra.mxu0 0
    %1561 = vmatprep.subr.bf16.mxu0 0
    %1562 = vmatpush1.bf16.msra.mxu0 0
    %1563 = vmatprep.mubr.bf16.mxu0 0
    %1564 = vmatmul.mubr.bf16.gmra.mrb[0].mxu0 %v1459
    %v1565 = vpop.f32.mrb[0].mxu0
    %v1566 = vadd.f32 %v1481, %v1565
    %v1567 = vpop.f32.mrb[0].mxu0
    %v1568 = vpop.f32.mrb[0].mxu0
    %v1569 = vpop.f32.mrb[0].mxu0
    %1570 = vdwg.mxu0
    %v1571 = vpack.c.bf16 %v1566, %v1566
    %v1572 = vld [vmem:[#allocation7] sm:$0xf]
    %v1573 = vld [vmem:[#allocation7 + $0x4] sm:$0xf]
    %v1574 = vld [vmem:[#allocation7 + $0x8] sm:$0xf]
    %v1575 = vld [vmem:[#allocation7 + $0xc] sm:$0xf]
    %v1576 = vld [vmem:[#allocation7 + $0x10] sm:$0xf]
    %v1577 = vld [vmem:[#allocation7 + $0x14] sm:$0xf]
    %v1578 = vld [vmem:[#allocation7 + $0x18] sm:$0xf]
    %v1579 = vld [vmem:[#allocation7 + $0x1c] sm:$0xf]
    %v1580 = vld [vmem:[#allocation7 + $0x20] sm:$0xf]
    %v1581 = vld [vmem:[#allocation7 + $0x24] sm:$0xf]
    %v1582 = vld [vmem:[#allocation7 + $0x28] sm:$0xf]
    %v1583 = vld [vmem:[#allocation7 + $0x2c] sm:$0xf]
    %v1584 = vld [vmem:[#allocation7 + $0x30] sm:$0xf]
    %v1585 = vld [vmem:[#allocation7 + $0x34] sm:$0xf]
    %v1586 = vld [vmem:[#allocation7 + $0x38] sm:$0xf]
    %v1587 = vld [vmem:[#allocation7 + $0x3c] sm:$0xf]
    %v1588 = vld [vmem:[%s8] sm:$0x1]
    %v1590 = vlaneseq
    %v1591 = vshrl.u32 %v1590, 7
    %v1592 = vsub.s32 0, %v1591
    %v1593 = vrot.slane %v1588, %v1592
    %v1611 = vunpack.c.l.b16 %v1572
    %v1612 = vunpack.c.l.b16 %v1573
    %v1613 = vunpack.c.l.b16 %v1574
    %v1614 = vunpack.c.l.b16 %v1575
    %v1615 = vunpack.c.l.b16 %v1576
    %v1616 = vunpack.c.l.b16 %v1577
    %v1617 = vunpack.c.l.b16 %v1578
    %v1618 = vunpack.c.l.b16 %v1579
    %v1619 = vunpack.c.l.b16 %v1580
    %v1620 = vunpack.c.l.b16 %v1581
    %v1621 = vunpack.c.l.b16 %v1582
    %v1622 = vunpack.c.l.b16 %v1583
    %v1623 = vunpack.c.l.b16 %v1584
    %v1624 = vunpack.c.l.b16 %v1585
    %v1625 = vunpack.c.l.b16 %v1586
    %v1626 = vunpack.c.l.b16 %v1587
    %v1627 = vpack.c.b16 %v1612, %v1611
    %v1628 = vpack.c.b16 %v1614, %v1613
    %v1629 = vpack.c.b16 %v1616, %v1615
    %v1630 = vpack.c.b16 %v1618, %v1617
    %v1631 = vpack.c.b16 %v1620, %v1619
    %v1632 = vpack.c.b16 %v1622, %v1621
    %v1633 = vpack.c.b16 %v1624, %v1623
    %v1634 = vpack.c.b16 %v1626, %v1625
    %1643 = vmatprep.subr.bf16.mxu0 0
    %1644 = vmatpush1.bf16.msra.mxu0 %v1627
    %1645 = vmatprep.subr.bf16.mxu0 0
    %1646 = vmatpush1.bf16.msra.mxu0 %v1628
    %1647 = vmatprep.subr.bf16.mxu0 0
    %1648 = vmatpush1.bf16.msra.mxu0 %v1629
    %1649 = vmatprep.subr.bf16.mxu0 0
    %1650 = vmatpush1.bf16.msra.mxu0 %v1630
    %1651 = vmatprep.subr.bf16.mxu0 0
    %1652 = vmatpush1.bf16.msra.mxu0 %v1631
    %1653 = vmatprep.subr.bf16.mxu0 0
    %1654 = vmatpush1.bf16.msra.mxu0 %v1632
    %1655 = vmatprep.subr.bf16.mxu0 0
    %1656 = vmatpush1.bf16.msra.mxu0 %v1633
    %1657 = vmatprep.subr.bf16.mxu0 0
    %1658 = vmatpush1.bf16.msra.mxu0 %v1634
    %1659 = vmatprep.subr.bf16.mxu0 0
    %1660 = vmatpush1.bf16.msra.mxu0 0
    %1661 = vmatprep.subr.bf16.mxu0 0
    %1662 = vmatpush1.bf16.msra.mxu0 0
    %1663 = vmatprep.subr.bf16.mxu0 0
    %1664 = vmatpush1.bf16.msra.mxu0 0
    %1665 = vmatprep.subr.bf16.mxu0 0
    %1666 = vmatpush1.bf16.msra.mxu0 0
    %1667 = vmatprep.subr.bf16.mxu0 0
    %1668 = vmatpush1.bf16.msra.mxu0 0
    %1669 = vmatprep.subr.bf16.mxu0 0
    %1670 = vmatpush1.bf16.msra.mxu0 0
    %1671 = vmatprep.subr.bf16.mxu0 0
    %1672 = vmatpush1.bf16.msra.mxu0 0
    %1673 = vmatprep.subr.bf16.mxu0 0
    %1674 = vmatpush1.bf16.msra.mxu0 0
    %1675 = vmatprep.mubr.bf16.mxu0 0
    %1676 = vmatmul.mubr.bf16.gmra.mrb[0].mxu0 %v1571
    %v1677 = vpop.f32.mrb[0].mxu0
    %v1678 = vadd.f32 %v1593, %v1677
    %v1679 = vpop.f32.mrb[0].mxu0
    %v1680 = vpop.f32.mrb[0].mxu0
    %v1681 = vpop.f32.mrb[0].mxu0
    %1682 = vdwg.mxu0
    %v1683 = vxor.u32 %v1678, 2147483648
    %v1684 = vmul.f32 %v1683, 1.442695
    %v1685 = vpow.pop %v1684
    %v1686 = vadd.f32 %v1685, 1.0
    %v1687 = vrcp.pop %v1686
    %v1688 = vmul.f32 1.0, %v1687
    %1689 = vst [vmem:[%s9] sm:$0xff] %v1688
    // Predicated region
    $region50: #{gru_model_forward.1} parent=1 // pred_check
      _
    $region51: #{gru_model_forward.1} parent=1 // pred_check_branch
      %1691 = sbr.rel (0) target = $region53
    $region52: #{gru_model_forward.1} parent=1 // pred_region
      _
    $region53: #{gru_model_forward.1} parent=1 // pred_fallthru
      _
    // Predicated region
    $region54: #{gru_model_forward.1} parent=1 // pred_check
      _
    $region55: #{gru_model_forward.1} parent=1 // pred_check_branch
      %1693 = sbr.rel (0) target = $region57
    $region56: #{gru_model_forward.1} parent=1 // pred_region
      _
    $region57: #{gru_model_forward.1} parent=1 // pred_fallthru
      _
    %1694 = vsyncpa [#allocation4], 1
    %1695 = vsyncpa [#allocation6], 1

</llo_original>
